<compile_context>
chip_gen: v6e
topology: v6e:2x2x1
jax: 0.10.0
libtpu: 0.0.40
codegen_flags: <defaults>
</compile_context>

<pallas_src>
import math
import functools

import jax
import jax.numpy as jnp
from jax import lax
from jax.experimental import pallas as pl
from jax.experimental.pallas import tpu as pltpu


def _vmem_limit_bytes():
    # v5e/v6e have 128 MiB physical VMEM -> use ~100 MiB; v7x has 64 MiB -> ~48 MiB.
    try:
        cap = int(pltpu.get_tpu_info().vmem_capacity_bytes)
    except Exception:
        cap = 64 * 1024 * 1024
    return max(32 * 1024 * 1024, min(cap - 16 * 1024 * 1024, 100 * 1024 * 1024))


def _pick_block_b(B, max_block=8):
    """Largest divisor of B that is <= max_block AND leaves >= 2 batch tiles,
    so megacore (v7x's two TensorCores) can shard the "parallel" grid axis."""
    limit = max(1, min(max_block, B // 2))
    bb = 1
    for d in range(1, limit + 1):
        if B % d == 0:
            bb = d
    return bb


# ----------------------------- in-kernel helpers -----------------------------

def _layernorm(x, g, b, eps=1e-5):
    # matches F.layer_norm semantics (biased variance, eps inside rsqrt)
    mu = jnp.mean(x, axis=-1, keepdims=True)
    var = jnp.mean((x - mu) ** 2, axis=-1, keepdims=True)
    return (x - mu) * lax.rsqrt(var + eps) * g + b


def _gelu(x):
    # TODO(synk): nn.GELU() defaults to the exact erf form; tanh approximation used
    # for robust Mosaic lowering (small numeric deviation vs the PyTorch reference).
    c = math.sqrt(2.0 / math.pi)
    return 0.5 * x * (1.0 + jnp.tanh(c * (x + 0.044715 * x * x * x)))


# ----------------------------- layer-fused transformer stack kernel -----------------------------

def transformer_stack_kernel(num_heads, collect_attn,
                             mask_ref, x_ref,
                             ln1g_ref, ln1b_ref,
                             wqkv_ref, bqkv_ref, wproj_ref, bproj_ref,
                             ln2g_ref, ln2b_ref,
                             wfc_ref, bfc_ref, wfp_ref, bfp_ref,
                             lnfg_ref, lnfb_ref,
                             emb_ref, *rest):
    if collect_attn:
        attn_ref = rest[0]
        x_acc, qkv_buf, head_buf = rest[1:]
    else:
        attn_ref = None
        x_acc, qkv_buf, head_buf = rest

    l = pl.program_id(1)
    n_layers = pl.num_programs(1)

    # Resident f32 activation lives in a VMEM scratch across the (arbitrary) layer axis.
    @pl.when(l == 0)
    def _():
        x_acc[...] = x_ref[...].astype(jnp.float32)

    x = x_acc[...]                                      # (TB, T, D) f32
    TB, T, D = x.shape
    nh = num_heads
    hd = D // nh
    scale = 1.0 / math.sqrt(hd)

    # --- attention sub-layer (pre-LN, causal: task='lm') ---
    xn = _layernorm(x, ln1g_ref[0], ln1b_ref[0])
    qkv = jnp.dot(xn.reshape(TB * T, D).astype(jnp.bfloat16), wqkv_ref[0],
                  preferred_element_type=jnp.float32) + bqkv_ref[0]
    # Park QKV in a bf16 scratch: heads read small static slices from VMEM instead of
    # slicing a huge live value (no vreg spills, no cross-lane relayout of the full qkv).
    qkv_buf[...] = qkv.reshape(TB, T, 3 * D).astype(jnp.bfloat16)

    mask = mask_ref[...]                                # (T, T) additive bias, hoisted

    for h in range(nh):
        qh = qkv_buf[:, :, 0 * D + h * hd:0 * D + (h + 1) * hd]   # (TB, T, hd) bf16
        kh = qkv_buf[:, :, 1 * D + h * hd:1 * D + (h + 1) * hd]
        vh = qkv_buf[:, :, 2 * D + h * hd:2 * D + (h + 1) * hd]
        s = jnp.einsum('bqd,bkd->bqk', qh, kh,
                       preferred_element_type=jnp.float32) * scale + mask
        m = jnp.max(s, axis=-1, keepdims=True)
        e = jnp.exp(s - m)
        p = e * pl.reciprocal(jnp.sum(e, axis=-1, keepdims=True))   # exact: rows sum to 1
        if collect_attn:
            attn_ref[:, h, :, :] = p.astype(attn_ref.dtype)         # bf16 writeback
        o_h = jnp.einsum('bqk,bkd->bqd', p.astype(jnp.bfloat16), vh,
                         preferred_element_type=jnp.float32)
        # write head output at its lane offset instead of accumulating a list + concat
        head_buf[:, :, h * hd:(h + 1) * hd] = o_h.astype(jnp.bfloat16)

    # single full-D output projection over the concatenated (in-scratch) head outputs
    y = jnp.dot(head_buf[...].reshape(TB * T, D), wproj_ref[0],
                preferred_element_type=jnp.float32) + bproj_ref[0]
    x1 = x + y.reshape(TB, T, D)                        # residual

    # --- MLP sub-layer (pre-LN) ---
    xn2 = _layernorm(x1, ln2g_ref[0], ln2b_ref[0])
    h1 = _gelu(jnp.dot(xn2.reshape(TB * T, D).astype(jnp.bfloat16), wfc_ref[0],
                       preferred_element_type=jnp.float32) + bfc_ref[0])
    h2 = jnp.dot(h1.astype(jnp.bfloat16), wfp_ref[0],
                 preferred_element_type=jnp.float32) + bfp_ref[0]
    x2 = x1 + h2.reshape(TB, T, D)                      # residual
    x_acc[...] = x2                                     # stays resident in VMEM

    # --- fused final LayerNorm: only the ln_f'd embedding ever goes back to HBM ---
    @pl.when(l == n_layers - 1)
    def _():
        emb_ref[...] = _layernorm(x2, lnfg_ref[...], lnfb_ref[...])


def make_stack_call(B, T, D, L, num_heads, collect_attn, block_b):
    nb = B // block_b

    x_in_spec = pl.BlockSpec((block_b, T, D), lambda b, l: (b, 0, 0))   # bf16 input
    emb_spec = pl.BlockSpec((block_b, T, D), lambda b, l: (b, 0, 0))    # f32 output
    mask_spec = pl.BlockSpec((T, T), lambda b, l: (0, 0))
    vec_spec = pl.BlockSpec((1, D), lambda b, l: (0, 0))                # ln_f params

    def lspec(tail):
        return pl.BlockSpec((1,) + tuple(tail), lambda b, l: (l,) + (0,) * len(tail))

    in_specs = [
        mask_spec, x_in_spec,
        lspec((1, D)), lspec((1, D)),              # ln1 gamma/beta
        lspec((D, 3 * D)), lspec((1, 3 * D)),      # w_qkv (bf16), b_qkv
        lspec((D, D)), lspec((1, D)),              # w_proj (bf16), b_proj
        lspec((1, D)), lspec((1, D)),              # ln2 gamma/beta
        lspec((D, 4 * D)), lspec((1, 4 * D)),      # w_fc (bf16), b_fc
        lspec((4 * D, D)), lspec((1, D)),          # w_fp (bf16), b_fp
        vec_spec, vec_spec,                        # ln_f gamma/beta
    ]

    out_shapes = [jax.ShapeDtypeStruct((B, T, D), jnp.float32)]         # embedding (ln_f(x))
    out_specs = [emb_spec]
    if collect_attn:
        # attention probs flattened as (L*B, nh, T, T) in bf16; reshaped in the wrapper
        out_shapes.append(jax.ShapeDtypeStruct((L * B, num_heads, T, T), jnp.bfloat16))
        out_specs.append(pl.BlockSpec((block_b, num_heads, T, T),
                                      lambda b, l: (l * nb + b, 0, 0, 0)))

    scratch = [
        pltpu.VMEM((block_b, T, D), jnp.float32),        # resident activation accumulator
        pltpu.VMEM((block_b, T, 3 * D), jnp.bfloat16),   # qkv staging
        pltpu.VMEM((block_b, T, D), jnp.bfloat16),       # concatenated head outputs
    ]

    kernel = functools.partial(transformer_stack_kernel, num_heads, collect_attn)
    return pl.pallas_call(
        kernel,
        grid=(nb, L),
        in_specs=in_specs,
        out_specs=tuple(out_specs),
        out_shape=tuple(out_shapes),
        scratch_shapes=scratch,
        compiler_params=pltpu.CompilerParams(
            dimension_semantics=("parallel", "arbitrary"),
            vmem_limit_bytes=_vmem_limit_bytes()),
    )


# ----------------------------- vocab-tiled lm_head on the last token -----------------------------

def lm_head_kernel(x_ref, w_ref, o_ref):
    # logits = x @ wte^T, contracted on D directly (no host-side transpose of wte)
    o_ref[...] = lax.dot_general(
        x_ref[...], w_ref[...],
        (((1,), (1,)), ((), ())),
        preferred_element_type=jnp.float32)


def make_lm_head_call(B, D, vocab, block_v):
    nv = pl.cdiv(vocab, block_v)
    return pl.pallas_call(
        lm_head_kernel,
        grid=(nv,),
        in_specs=[pl.BlockSpec((B, D), lambda j: (0, 0)),
                  pl.BlockSpec((block_v, D), lambda j: (j, 0))],
        out_specs=pl.BlockSpec((B, block_v), lambda j: (0, j)),
        out_shape=jax.ShapeDtypeStruct((B, vocab), jnp.float32),
        compiler_params=pltpu.CompilerParams(
            dimension_semantics=("parallel",),
            vmem_limit_bytes=_vmem_limit_bytes()),
    )


# ----------------------------- params & wrapper -----------------------------

def init_params(key, vocab_size, max_seq_len, D, num_layers, num_heads):
    std = 0.02
    proj_std = 0.02 / math.sqrt(2 * num_layers)        # c_proj.weight re-init
    ks = jax.random.split(key, 6)
    # Matmul weights stored in bf16 (MXU-native, half the HBM/VMEM traffic);
    # LN params and biases stay f32. prediction_head (unused when target=None) not materialized.
    return {
        'wte': (jax.random.normal(ks[0], (vocab_size, D)) * std).astype(jnp.bfloat16),  # tied lm_head
        'wpe': (jax.random.normal(ks[1], (max_seq_len, D)) * std).astype(jnp.float32),
        'ln_f_g': jnp.ones((1, D), jnp.float32),
        'ln_f_b': jnp.zeros((1, D), jnp.float32),
        'ln1_g': jnp.ones((num_layers, 1, D), jnp.float32),
        'ln1_b': jnp.zeros((num_layers, 1, D), jnp.float32),
        'w_qkv': (jax.random.normal(ks[2], (num_layers, D, 3 * D)) * std).astype(jnp.bfloat16),
        'b_qkv': jnp.zeros((num_layers, 1, 3 * D), jnp.float32),
        'w_proj': (jax.random.normal(ks[3], (num_layers, D, D)) * proj_std).astype(jnp.bfloat16),
        'b_proj': jnp.zeros((num_layers, 1, D), jnp.float32),
        'ln2_g': jnp.ones((num_layers, 1, D), jnp.float32),
        'ln2_b': jnp.zeros((num_layers, 1, D), jnp.float32),
        'w_fc': (jax.random.normal(ks[4], (num_layers, D, 4 * D)) * std).astype(jnp.bfloat16),
        'b_fc': jnp.zeros((num_layers, 1, 4 * D), jnp.float32),
        'w_fp': (jax.random.normal(ks[5], (num_layers, 4 * D, D)) * proj_std).astype(jnp.bfloat16),
        'b_fp': jnp.zeros((num_layers, 1, D), jnp.float32),
    }


def transformer_forward(params, input_ids, num_heads, collect_attention=True):
    """Forward pass: task='lm', labels=None, target=None (inference path)."""
    B, T = input_ids.shape
    vocab, D = params['wte'].shape
    L = params['w_qkv'].shape[0]

    # Embedding gathers stay in plain JAX (glue); dropout is identity (eval / p=0).
    tok_emb = params['wte'][input_ids].astype(jnp.float32)       # (B, T, D)
    pos_emb = params['wpe'][:T]                                  # (T, D)
    x = (tok_emb + pos_emb[None, :, :]).astype(jnp.bfloat16)     # bf16 halves the read-once block

    # Additive causal-mask bias (0 where allowed, -1e30 where masked), computed once.
    row = lax.broadcasted_iota(jnp.int32, (T, T), 0)
    col = lax.broadcasted_iota(jnp.int32, (T, T), 1)
    mask_bias = jnp.where(row >= col, 0.0, -1e30).astype(jnp.float32)

    block_b = _pick_block_b(B)          # guarantees >= 2 "parallel" tiles when B >= 2

    stack = make_stack_call(B, T, D, L, num_heads, collect_attention, block_b)
    outs = stack(mask_bias, x,
                 params['ln1_g'], params['ln1_b'],
                 params['w_qkv'], params['b_qkv'],
                 params['w_proj'], params['b_proj'],
                 params['ln2_g'], params['ln2_b'],
                 params['w_fc'], params['b_fc'],
                 params['w_fp'], params['b_fp'],
                 params['ln_f_g'], params['ln_f_b'])
    emb = outs[0]                                                # (B, T, D) after ln_f
    if collect_attention:
        attn_probs = outs[1].reshape(L, B, num_heads, T, T)      # bf16
    else:
        attn_probs = None

    last_tok = emb[:, -1, :].astype(jnp.bfloat16)                # x[:, [-1], :]
    block_v = vocab if vocab <= 1024 else 1024
    head = make_lm_head_call(B, D, vocab, block_v)
    logits = head(last_tok, params['wte'])                       # weight tying: lm_head = wte
    lm_logits = logits[:, None, :]                               # (B, 1, vocab)

    return {
        'loss': None,
        'unsupervised_loss': None,                               # labels is None
        'supervised_loss': None,                                 # target is None
        'lm_logits': lm_logits,
        'prediction': None,
        'embedding': emb,                                        # (B, T, D) after ln_f
        'attention_probabilities': attn_probs,                   # (L, B, nh, T, T) bf16 or None
    }


if __name__ == "__main__":
    B, T = 2, 8
    vocab_size, max_seq_len, D, num_heads, num_layers = 64, 16, 32, 4, 2

    key = jax.random.PRNGKey(0)
    k_params, k_ids = jax.random.split(key)
    params = init_params(k_params, vocab_size, max_seq_len, D, num_layers, num_heads)
    input_ids = jax.random.randint(k_ids, (B, T), 0, vocab_size, dtype=jnp.int32)

    out = transformer_forward(params, input_ids, num_heads, collect_attention=True)
    for leaf in jax.tree_util.tree_leaves(out):
        jax.block_until_ready(leaf)

    assert out['lm_logits'].shape == (B, 1, vocab_size)
    assert out['embedding'].shape == (B, T, D)
    assert out['attention_probabilities'].shape == (num_layers, B, num_heads, T, T)
    assert bool(jnp.all(jnp.isfinite(out['lm_logits'])))
    assert bool(jnp.all(jnp.isfinite(out['embedding'])))
    print("KERNEL_OK")
</pallas_src>

<mosaic_0001>
module attributes {stable_mosaic.version = 11 : i64} {
  func.func @transformer_stack_kernel(%arg0: i32, %arg1: i32, %arg2: memref<8x8xf32, #tpu.memory_space<vmem>>, %arg3: memref<1x8x32xbf16, #tpu.memory_space<vmem>>, %arg4: memref<1x1x32xf32, #tpu.memory_space<vmem>>, %arg5: memref<1x1x32xf32, #tpu.memory_space<vmem>>, %arg6: memref<1x32x96xbf16, #tpu.memory_space<vmem>>, %arg7: memref<1x1x96xf32, #tpu.memory_space<vmem>>, %arg8: memref<1x32x32xbf16, #tpu.memory_space<vmem>>, %arg9: memref<1x1x32xf32, #tpu.memory_space<vmem>>, %arg10: memref<1x1x32xf32, #tpu.memory_space<vmem>>, %arg11: memref<1x1x32xf32, #tpu.memory_space<vmem>>, %arg12: memref<1x32x128xbf16, #tpu.memory_space<vmem>>, %arg13: memref<1x1x128xf32, #tpu.memory_space<vmem>>, %arg14: memref<1x128x32xbf16, #tpu.memory_space<vmem>>, %arg15: memref<1x1x32xf32, #tpu.memory_space<vmem>>, %arg16: memref<1x32xf32, #tpu.memory_space<vmem>>, %arg17: memref<1x32xf32, #tpu.memory_space<vmem>>, %arg18: memref<1x8x32xf32, #tpu.memory_space<vmem>>, %arg19: memref<1x4x8x8xbf16, #tpu.memory_space<vmem>>, %arg20: memref<1x8x32xf32, #tpu.memory_space<vmem>>, %arg21: memref<1x8x96xbf16, #tpu.memory_space<vmem>>, %arg22: memref<1x8x32xbf16, #tpu.memory_space<vmem>>) attributes {dimension_semantics = [#tpu.dimension_semantics<parallel>, #tpu.dimension_semantics<arbitrary>], iteration_bounds = array<i64: 2, 2>, scalar_prefetch = 0 : i64, scratch_operands = 3 : i64, tpu.core_type = #tpu.core_type<tc>, window_params = [{pipeline_mode = #tpu.pipeline_mode<synchronous>, transform_indices = @transform_0, window_bounds = array<i64: 8, 8>}, {transform_indices = @transform_1, window_bounds = array<i64: 1, 8, 32>}, {transform_indices = @transform_2, window_bounds = array<i64: 1, 1, 32>}, {transform_indices = @transform_3, window_bounds = array<i64: 1, 1, 32>}, {transform_indices = @transform_4, window_bounds = array<i64: 1, 32, 96>}, {transform_indices = @transform_5, window_bounds = array<i64: 1, 1, 96>}, {transform_indices = @transform_6, window_bounds = array<i64: 1, 32, 32>}, {transform_indices = @transform_7, window_bounds = array<i64: 1, 1, 32>}, {transform_indices = @transform_8, window_bounds = array<i64: 1, 1, 32>}, {transform_indices = @transform_9, window_bounds = array<i64: 1, 1, 32>}, {transform_indices = @transform_10, window_bounds = array<i64: 1, 32, 128>}, {transform_indices = @transform_11, window_bounds = array<i64: 1, 1, 128>}, {transform_indices = @transform_12, window_bounds = array<i64: 1, 128, 32>}, {transform_indices = @transform_13, window_bounds = array<i64: 1, 1, 32>}, {pipeline_mode = #tpu.pipeline_mode<synchronous>, transform_indices = @transform_14, window_bounds = array<i64: 1, 32>}, {pipeline_mode = #tpu.pipeline_mode<synchronous>, transform_indices = @transform_15, window_bounds = array<i64: 1, 32>}, {transform_indices = @transform_16, window_bounds = array<i64: 1, 8, 32>}, {transform_indices = @transform_17, window_bounds = array<i64: 1, 4, 8, 8>}]} {
    %c0_i32 = arith.constant 0 : i32
    %0 = arith.cmpi eq, %arg1, %c0_i32 : i32
    %1 = arith.extui %0 : i1 to i32
    %c0_i32_0 = arith.constant 0 : i32
    %2 = arith.cmpi ne, %1, %c0_i32_0 : i32
    scf.if %2 {
      %c0_138 = arith.constant 0 : index
      %c0_139 = arith.constant 0 : index
      %c0_140 = arith.constant 0 : index
      %224 = vector.load %arg3[%c0_138, %c0_139, %c0_140] : memref<1x8x32xbf16, #tpu.memory_space<vmem>>, vector<1x8x32xbf16>
      %225 = arith.extf %224 : vector<1x8x32xbf16> to vector<1x8x32xf32>
      %c0_141 = arith.constant 0 : index
      %c0_142 = arith.constant 0 : index
      %c0_143 = arith.constant 0 : index
      %226 = vector.load %arg20[%c0_141, %c0_142, %c0_143] : memref<1x8x32xf32, #tpu.memory_space<vmem>>, vector<1x8x32xf32>
      tpu.vector_store %arg20[%c0_141, %c0_142, %c0_143], %225 {strides = array<i32>} : memref<1x8x32xf32, #tpu.memory_space<vmem>>, vector<1x8x32xf32>,
    } else {
    }
    %c0 = arith.constant 0 : index
    %c0_1 = arith.constant 0 : index
    %c0_2 = arith.constant 0 : index
    %3 = vector.load %arg20[%c0, %c0_1, %c0_2] : memref<1x8x32xf32, #tpu.memory_space<vmem>>, vector<1x8x32xf32>
    %c0_3 = arith.constant 0 : index
    %c0_4 = arith.constant 0 : index
    %c0_5 = arith.constant 0 : index
    %4 = vector.load %arg4[%c0_3, %c0_4, %c0_5] : memref<1x1x32xf32, #tpu.memory_space<vmem>>, vector<1x1x32xf32>
    %5 = vector.shape_cast %4 : vector<1x1x32xf32> to vector<1x32xf32>
    %c0_6 = arith.constant 0 : index
    %c0_7 = arith.constant 0 : index
    %c0_8 = arith.constant 0 : index
    %6 = vector.load %arg5[%c0_6, %c0_7, %c0_8] : memref<1x1x32xf32, #tpu.memory_space<vmem>>, vector<1x1x32xf32>
    %7 = vector.shape_cast %6 : vector<1x1x32xf32> to vector<1x32xf32>
    %cst = arith.constant dense<0.000000e+00> : vector<1x8xf32>
    %8 = vector.multi_reduction <add>, %3, %cst [2] : vector<1x8x32xf32> to vector<1x8xf32>
    %9 = vector.shape_cast %8 : vector<1x8xf32> to vector<1x8x1xf32>
    %cst_9 = arith.constant 3.200000e+01 : f32
    %10 = vector.broadcast %cst_9 : f32 to vector<1x8x1xf32>
    %11 = arith.divf %9, %10 : vector<1x8x1xf32>
    %12 = vector.broadcast %11 : vector<1x8x1xf32> to vector<1x8x32xf32>
    %13 = arith.subf %3, %12 : vector<1x8x32xf32>
    %14 = arith.mulf %13, %13 : vector<1x8x32xf32>
    %cst_10 = arith.constant dense<0.000000e+00> : vector<1x8xf32>
    %15 = vector.multi_reduction <add>, %14, %cst_10 [2] : vector<1x8x32xf32> to vector<1x8xf32>
    %16 = vector.shape_cast %15 : vector<1x8xf32> to vector<1x8x1xf32>
    %cst_11 = arith.constant 3.200000e+01 : f32
    %17 = vector.broadcast %cst_11 : f32 to vector<1x8x1xf32>
    %18 = arith.divf %16, %17 : vector<1x8x1xf32>
    %19 = vector.broadcast %11 : vector<1x8x1xf32> to vector<1x8x32xf32>
    %20 = arith.subf %3, %19 : vector<1x8x32xf32>
    %cst_12 = arith.constant 9.99999974E-6 : f32
    %21 = vector.broadcast %cst_12 : f32 to vector<1x8x1xf32>
    %22 = arith.addf %18, %21 : vector<1x8x1xf32>
    %23 = math.rsqrt %22 : vector<1x8x1xf32>
    %24 = vector.broadcast %23 : vector<1x8x1xf32> to vector<1x8x32xf32>
    %25 = arith.mulf %20, %24 : vector<1x8x32xf32>
    %26 = vector.shape_cast %5 : vector<1x32xf32> to vector<1x1x32xf32>
    %27 = vector.broadcast %26 : vector<1x1x32xf32> to vector<1x8x32xf32>
    %28 = arith.mulf %25, %27 : vector<1x8x32xf32>
    %29 = vector.shape_cast %7 : vector<1x32xf32> to vector<1x1x32xf32>
    %30 = vector.broadcast %29 : vector<1x1x32xf32> to vector<1x8x32xf32>
    %31 = arith.addf %28, %30 : vector<1x8x32xf32>
    %32 = vector.shape_cast %31 : vector<1x8x32xf32> to vector<8x32xf32>
    %33 = arith.truncf %32 : vector<8x32xf32> to vector<8x32xbf16>
    %c0_13 = arith.constant 0 : index
    %c0_14 = arith.constant 0 : index
    %c0_15 = arith.constant 0 : index
    %34 = vector.load %arg6[%c0_13, %c0_14, %c0_15] : memref<1x32x96xbf16, #tpu.memory_space<vmem>>, vector<1x32x96xbf16>
    %35 = vector.shape_cast %34 : vector<1x32x96xbf16> to vector<32x96xbf16>
    %cst_16 = arith.constant dense<0.000000e+00> : vector<8x96xf32>
    %36 = tpu.matmul %33, %35, %cst_16 {dimension_numbers = #tpu.dot_dimension_numbers<[1], [0], [0], [1], [0, 0, 1, 1], [], []>} : vector<8x32xbf16>, vector<32x96xbf16>, vector<8x96xf32> -> vector<8x96xf32>
    %c0_17 = arith.constant 0 : index
    %c0_18 = arith.constant 0 : index
    %c0_19 = arith.constant 0 : index
    %37 = vector.load %arg7[%c0_17, %c0_18, %c0_19] : memref<1x1x96xf32, #tpu.memory_space<vmem>>, vector<1x1x96xf32>
    %38 = vector.shape_cast %37 : vector<1x1x96xf32> to vector<1x96xf32>
    %39 = vector.broadcast %38 : vector<1x96xf32> to vector<8x96xf32>
    %40 = arith.addf %36, %39 : vector<8x96xf32>
    %41 = vector.shape_cast %40 : vector<8x96xf32> to vector<1x8x96xf32>
    %42 = arith.truncf %41 : vector<1x8x96xf32> to vector<1x8x96xbf16>
    %c0_20 = arith.constant 0 : index
    %c0_21 = arith.constant 0 : index
    %c0_22 = arith.constant 0 : index
    %43 = vector.load %arg21[%c0_20, %c0_21, %c0_22] : memref<1x8x96xbf16, #tpu.memory_space<vmem>>, vector<1x8x96xbf16>
    tpu.vector_store %arg21[%c0_20, %c0_21, %c0_22], %42 {strides = array<i32>} : memref<1x8x96xbf16, #tpu.memory_space<vmem>>, vector<1x8x96xbf16>,
    %c0_23 = arith.constant 0 : index
    %c0_24 = arith.constant 0 : index
    %44 = vector.load %arg2[%c0_23, %c0_24] : memref<8x8xf32, #tpu.memory_space<vmem>>, vector<8x8xf32>
    %c0_25 = arith.constant 0 : index
    %c0_26 = arith.constant 0 : index
    %c0_27 = arith.constant 0 : index
    %45 = vector.load %arg21[%c0_25, %c0_26, %c0_27] : memref<1x8x96xbf16, #tpu.memory_space<vmem>>, vector<1x8x8xbf16>
    %c0_28 = arith.constant 0 : index
    %c0_29 = arith.constant 0 : index
    %c32 = arith.constant 32 : index
    %46 = vector.load %arg21[%c0_28, %c0_29, %c32] : memref<1x8x96xbf16, #tpu.memory_space<vmem>>, vector<1x8x8xbf16>
    %c0_30 = arith.constant 0 : index
    %c0_31 = arith.constant 0 : index
    %c64 = arith.constant 64 : index
    %47 = vector.load %arg21[%c0_30, %c0_31, %c64] : memref<1x8x96xbf16, #tpu.memory_space<vmem>>, vector<1x8x8xbf16>
    "tpu.trace_start"() <{level = 10 : i32, message = "bqd,bkd->bqk"}> : () -> ()
    %cst_32 = arith.constant dense<0.000000e+00> : vector<1x8x8xf32>
    %48 = tpu.matmul %45, %46, %cst_32 {dimension_numbers = #tpu.dot_dimension_numbers<[2], [2], [1], [1], [0, 0, 0, 1, 1, 1], [0], [0]>} : vector<1x8x8xbf16>, vector<1x8x8xbf16>, vector<1x8x8xf32> -> vector<1x8x8xf32>
    "tpu.trace_stop"() : () -> ()
    %cst_33 = arith.constant 0.353553385 : f32
    %49 = vector.broadcast %cst_33 : f32 to vector<1x8x8xf32>
    %50 = arith.mulf %48, %49 : vector<1x8x8xf32>
    %51 = vector.shape_cast %44 : vector<8x8xf32> to vector<1x8x8xf32>
    %52 = arith.addf %50, %51 : vector<1x8x8xf32>
    %cst_34 = arith.constant dense<0xFF800000> : vector<1x8xf32>
    %53 = vector.multi_reduction <maximumf>, %52, %cst_34 [2] : vector<1x8x8xf32> to vector<1x8xf32>
    %54 = vector.shape_cast %53 : vector<1x8xf32> to vector<1x8x1xf32>
    %55 = vector.broadcast %54 : vector<1x8x1xf32> to vector<1x8x8xf32>
    %56 = arith.subf %52, %55 : vector<1x8x8xf32>
    %57 = math.exp %56 : vector<1x8x8xf32>
    %cst_35 = arith.constant dense<0.000000e+00> : vector<1x8xf32>
    %58 = vector.multi_reduction <add>, %57, %cst_35 [2] : vector<1x8x8xf32> to vector<1x8xf32>
    %59 = vector.shape_cast %58 : vector<1x8xf32> to vector<1x8x1xf32>
    %60 = tpu.reciprocal %59 : vector<1x8x1xf32> -> vector<1x8x1xf32>
    %61 = vector.broadcast %60 : vector<1x8x1xf32> to vector<1x8x8xf32>
    %62 = arith.mulf %57, %61 : vector<1x8x8xf32>
    %63 = arith.truncf %62 : vector<1x8x8xf32> to vector<1x8x8xbf16>
    %c0_36 = arith.constant 0 : index
    %c0_37 = arith.constant 0 : index
    %c0_38 = arith.constant 0 : index
    %c0_39 = arith.constant 0 : index
    %64 = vector.load %arg19[%c0_36, %c0_37, %c0_38, %c0_39] : memref<1x4x8x8xbf16, #tpu.memory_space<vmem>>, vector<1x1x8x8xbf16>
    %65 = vector.shape_cast %64 : vector<1x1x8x8xbf16> to vector<1x8x8xbf16>
    %66 = vector.shape_cast %63 : vector<1x8x8xbf16> to vector<1x1x8x8xbf16>
    tpu.vector_store %arg19[%c0_36, %c0_37, %c0_38, %c0_39], %66 {strides = array<i32>} : memref<1x4x8x8xbf16, #tpu.memory_space<vmem>>, vector<1x1x8x8xbf16>,
    %67 = arith.truncf %62 : vector<1x8x8xf32> to vector<1x8x8xbf16>
    "tpu.trace_start"() <{level = 10 : i32, message = "bqk,bkd->bqd"}> : () -> ()
    %cst_40 = arith.constant dense<0.000000e+00> : vector<1x8x8xf32>
    %68 = tpu.matmul %67, %47, %cst_40 {dimension_numbers = #tpu.dot_dimension_numbers<[2], [1], [1], [2], [0, 0, 0, 1, 1, 2], [0], [0]>} : vector<1x8x8xbf16>, vector<1x8x8xbf16>, vector<1x8x8xf32> -> vector<1x8x8xf32>
    "tpu.trace_stop"() : () -> ()
    %69 = arith.truncf %68 : vector<1x8x8xf32> to vector<1x8x8xbf16>
    %c0_41 = arith.constant 0 : index
    %c0_42 = arith.constant 0 : index
    %c0_43 = arith.constant 0 : index
    %70 = vector.load %arg22[%c0_41, %c0_42, %c0_43] : memref<1x8x32xbf16, #tpu.memory_space<vmem>>, vector<1x8x8xbf16>
    tpu.vector_store %arg22[%c0_41, %c0_42, %c0_43], %69 {strides = array<i32>} : memref<1x8x32xbf16, #tpu.memory_space<vmem>>, vector<1x8x8xbf16>,
    %c0_44 = arith.constant 0 : index
    %c0_45 = arith.constant 0 : index
    %c8 = arith.constant 8 : index
    %71 = vector.load %arg21[%c0_44, %c0_45, %c8] : memref<1x8x96xbf16, #tpu.memory_space<vmem>>, vector<1x8x8xbf16>
    %c0_46 = arith.constant 0 : index
    %c0_47 = arith.constant 0 : index
    %c40 = arith.constant 40 : index
    %72 = vector.load %arg21[%c0_46, %c0_47, %c40] : memref<1x8x96xbf16, #tpu.memory_space<vmem>>, vector<1x8x8xbf16>
    %c0_48 = arith.constant 0 : index
    %c0_49 = arith.constant 0 : index
    %c72 = arith.constant 72 : index
    %73 = vector.load %arg21[%c0_48, %c0_49, %c72] : memref<1x8x96xbf16, #tpu.memory_space<vmem>>, vector<1x8x8xbf16>
    "tpu.trace_start"() <{level = 10 : i32, message = "bqd,bkd->bqk"}> : () -> ()
    %cst_50 = arith.constant dense<0.000000e+00> : vector<1x8x8xf32>
    %74 = tpu.matmul %71, %72, %cst_50 {dimension_numbers = #tpu.dot_dimension_numbers<[2], [2], [1], [1], [0, 0, 0, 1, 1, 1], [0], [0]>} : vector<1x8x8xbf16>, vector<1x8x8xbf16>, vector<1x8x8xf32> -> vector<1x8x8xf32>
    "tpu.trace_stop"() : () -> ()
    %cst_51 = arith.constant 0.353553385 : f32
    %75 = vector.broadcast %cst_51 : f32 to vector<1x8x8xf32>
    %76 = arith.mulf %74, %75 : vector<1x8x8xf32>
    %77 = vector.shape_cast %44 : vector<8x8xf32> to vector<1x8x8xf32>
    %78 = arith.addf %76, %77 : vector<1x8x8xf32>
    %cst_52 = arith.constant dense<0xFF800000> : vector<1x8xf32>
    %79 = vector.multi_reduction <maximumf>, %78, %cst_52 [2] : vector<1x8x8xf32> to vector<1x8xf32>
    %80 = vector.shape_cast %79 : vector<1x8xf32> to vector<1x8x1xf32>
    %81 = vector.broadcast %80 : vector<1x8x1xf32> to vector<1x8x8xf32>
    %82 = arith.subf %78, %81 : vector<1x8x8xf32>
    %83 = math.exp %82 : vector<1x8x8xf32>
    %cst_53 = arith.constant dense<0.000000e+00> : vector<1x8xf32>
    %84 = vector.multi_reduction <add>, %83, %cst_53 [2] : vector<1x8x8xf32> to vector<1x8xf32>
    %85 = vector.shape_cast %84 : vector<1x8xf32> to vector<1x8x1xf32>
    %86 = tpu.reciprocal %85 : vector<1x8x1xf32> -> vector<1x8x1xf32>
    %87 = vector.broadcast %86 : vector<1x8x1xf32> to vector<1x8x8xf32>
    %88 = arith.mulf %83, %87 : vector<1x8x8xf32>
    %89 = arith.truncf %88 : vector<1x8x8xf32> to vector<1x8x8xbf16>
    %c0_54 = arith.constant 0 : index
    %c1 = arith.constant 1 : index
    %c0_55 = arith.constant 0 : index
    %c0_56 = arith.constant 0 : index
    %90 = vector.load %arg19[%c0_54, %c1, %c0_55, %c0_56] : memref<1x4x8x8xbf16, #tpu.memory_space<vmem>>, vector<1x1x8x8xbf16>
    %91 = vector.shape_cast %90 : vector<1x1x8x8xbf16> to vector<1x8x8xbf16>
    %92 = vector.shape_cast %89 : vector<1x8x8xbf16> to vector<1x1x8x8xbf16>
    tpu.vector_store %arg19[%c0_54, %c1, %c0_55, %c0_56], %92 {strides = array<i32>} : memref<1x4x8x8xbf16, #tpu.memory_space<vmem>>, vector<1x1x8x8xbf16>,
    %93 = arith.truncf %88 : vector<1x8x8xf32> to vector<1x8x8xbf16>
    "tpu.trace_start"() <{level = 10 : i32, message = "bqk,bkd->bqd"}> : () -> ()
    %cst_57 = arith.constant dense<0.000000e+00> : vector<1x8x8xf32>
    %94 = tpu.matmul %93, %73, %cst_57 {dimension_numbers = #tpu.dot_dimension_numbers<[2], [1], [1], [2], [0, 0, 0, 1, 1, 2], [0], [0]>} : vector<1x8x8xbf16>, vector<1x8x8xbf16>, vector<1x8x8xf32> -> vector<1x8x8xf32>
    "tpu.trace_stop"() : () -> ()
    %95 = arith.truncf %94 : vector<1x8x8xf32> to vector<1x8x8xbf16>
    %c0_58 = arith.constant 0 : index
    %c0_59 = arith.constant 0 : index
    %c8_60 = arith.constant 8 : index
    %96 = vector.load %arg22[%c0_58, %c0_59, %c8_60] : memref<1x8x32xbf16, #tpu.memory_space<vmem>>, vector<1x8x8xbf16>
    tpu.vector_store %arg22[%c0_58, %c0_59, %c8_60], %95 {strides = array<i32>} : memref<1x8x32xbf16, #tpu.memory_space<vmem>>, vector<1x8x8xbf16>,
    %c0_61 = arith.constant 0 : index
    %c0_62 = arith.constant 0 : index
    %c16 = arith.constant 16 : index
    %97 = vector.load %arg21[%c0_61, %c0_62, %c16] : memref<1x8x96xbf16, #tpu.memory_space<vmem>>, vector<1x8x8xbf16>
    %c0_63 = arith.constant 0 : index
    %c0_64 = arith.constant 0 : index
    %c48 = arith.constant 48 : index
    %98 = vector.load %arg21[%c0_63, %c0_64, %c48] : memref<1x8x96xbf16, #tpu.memory_space<vmem>>, vector<1x8x8xbf16>
    %c0_65 = arith.constant 0 : index
    %c0_66 = arith.constant 0 : index
    %c80 = arith.constant 80 : index
    %99 = vector.load %arg21[%c0_65, %c0_66, %c80] : memref<1x8x96xbf16, #tpu.memory_space<vmem>>, vector<1x8x8xbf16>
    "tpu.trace_start"() <{level = 10 : i32, message = "bqd,bkd->bqk"}> : () -> ()
    %cst_67 = arith.constant dense<0.000000e+00> : vector<1x8x8xf32>
    %100 = tpu.matmul %97, %98, %cst_67 {dimension_numbers = #tpu.dot_dimension_numbers<[2], [2], [1], [1], [0, 0, 0, 1, 1, 1], [0], [0]>} : vector<1x8x8xbf16>, vector<1x8x8xbf16>, vector<1x8x8xf32> -> vector<1x8x8xf32>
    "tpu.trace_stop"() : () -> ()
    %cst_68 = arith.constant 0.353553385 : f32
    %101 = vector.broadcast %cst_68 : f32 to vector<1x8x8xf32>
    %102 = arith.mulf %100, %101 : vector<1x8x8xf32>
    %103 = vector.shape_cast %44 : vector<8x8xf32> to vector<1x8x8xf32>
    %104 = arith.addf %102, %103 : vector<1x8x8xf32>
    %cst_69 = arith.constant dense<0xFF800000> : vector<1x8xf32>
    %105 = vector.multi_reduction <maximumf>, %104, %cst_69 [2] : vector<1x8x8xf32> to vector<1x8xf32>
    %106 = vector.shape_cast %105 : vector<1x8xf32> to vector<1x8x1xf32>
    %107 = vector.broadcast %106 : vector<1x8x1xf32> to vector<1x8x8xf32>
    %108 = arith.subf %104, %107 : vector<1x8x8xf32>
    %109 = math.exp %108 : vector<1x8x8xf32>
    %cst_70 = arith.constant dense<0.000000e+00> : vector<1x8xf32>
    %110 = vector.multi_reduction <add>, %109, %cst_70 [2] : vector<1x8x8xf32> to vector<1x8xf32>
    %111 = vector.shape_cast %110 : vector<1x8xf32> to vector<1x8x1xf32>
    %112 = tpu.reciprocal %111 : vector<1x8x1xf32> -> vector<1x8x1xf32>
    %113 = vector.broadcast %112 : vector<1x8x1xf32> to vector<1x8x8xf32>
    %114 = arith.mulf %109, %113 : vector<1x8x8xf32>
    %115 = arith.truncf %114 : vector<1x8x8xf32> to vector<1x8x8xbf16>
    %c0_71 = arith.constant 0 : index
    %c2 = arith.constant 2 : index
    %c0_72 = arith.constant 0 : index
    %c0_73 = arith.constant 0 : index
    %116 = vector.load %arg19[%c0_71, %c2, %c0_72, %c0_73] : memref<1x4x8x8xbf16, #tpu.memory_space<vmem>>, vector<1x1x8x8xbf16>
    %117 = vector.shape_cast %116 : vector<1x1x8x8xbf16> to vector<1x8x8xbf16>
    %118 = vector.shape_cast %115 : vector<1x8x8xbf16> to vector<1x1x8x8xbf16>
    tpu.vector_store %arg19[%c0_71, %c2, %c0_72, %c0_73], %118 {strides = array<i32>} : memref<1x4x8x8xbf16, #tpu.memory_space<vmem>>, vector<1x1x8x8xbf16>,
    %119 = arith.truncf %114 : vector<1x8x8xf32> to vector<1x8x8xbf16>
    "tpu.trace_start"() <{level = 10 : i32, message = "bqk,bkd->bqd"}> : () -> ()
    %cst_74 = arith.constant dense<0.000000e+00> : vector<1x8x8xf32>
    %120 = tpu.matmul %119, %99, %cst_74 {dimension_numbers = #tpu.dot_dimension_numbers<[2], [1], [1], [2], [0, 0, 0, 1, 1, 2], [0], [0]>} : vector<1x8x8xbf16>, vector<1x8x8xbf16>, vector<1x8x8xf32> -> vector<1x8x8xf32>
    "tpu.trace_stop"() : () -> ()
    %121 = arith.truncf %120 : vector<1x8x8xf32> to vector<1x8x8xbf16>
    %c0_75 = arith.constant 0 : index
    %c0_76 = arith.constant 0 : index
    %c16_77 = arith.constant 16 : index
    %122 = vector.load %arg22[%c0_75, %c0_76, %c16_77] : memref<1x8x32xbf16, #tpu.memory_space<vmem>>, vector<1x8x8xbf16>
    tpu.vector_store %arg22[%c0_75, %c0_76, %c16_77], %121 {strides = array<i32>} : memref<1x8x32xbf16, #tpu.memory_space<vmem>>, vector<1x8x8xbf16>,
    %c0_78 = arith.constant 0 : index
    %c0_79 = arith.constant 0 : index
    %c24 = arith.constant 24 : index
    %123 = vector.load %arg21[%c0_78, %c0_79, %c24] : memref<1x8x96xbf16, #tpu.memory_space<vmem>>, vector<1x8x8xbf16>
    %c0_80 = arith.constant 0 : index
    %c0_81 = arith.constant 0 : index
    %c56 = arith.constant 56 : index
    %124 = vector.load %arg21[%c0_80, %c0_81, %c56] : memref<1x8x96xbf16, #tpu.memory_space<vmem>>, vector<1x8x8xbf16>
    %c0_82 = arith.constant 0 : index
    %c0_83 = arith.constant 0 : index
    %c88 = arith.constant 88 : index
    %125 = vector.load %arg21[%c0_82, %c0_83, %c88] : memref<1x8x96xbf16, #tpu.memory_space<vmem>>, vector<1x8x8xbf16>
    "tpu.trace_start"() <{level = 10 : i32, message = "bqd,bkd->bqk"}> : () -> ()
    %cst_84 = arith.constant dense<0.000000e+00> : vector<1x8x8xf32>
    %126 = tpu.matmul %123, %124, %cst_84 {dimension_numbers = #tpu.dot_dimension_numbers<[2], [2], [1], [1], [0, 0, 0, 1, 1, 1], [0], [0]>} : vector<1x8x8xbf16>, vector<1x8x8xbf16>, vector<1x8x8xf32> -> vector<1x8x8xf32>
    "tpu.trace_stop"() : () -> ()
    %cst_85 = arith.constant 0.353553385 : f32
    %127 = vector.broadcast %cst_85 : f32 to vector<1x8x8xf32>
    %128 = arith.mulf %126, %127 : vector<1x8x8xf32>
    %129 = vector.shape_cast %44 : vector<8x8xf32> to vector<1x8x8xf32>
    %130 = arith.addf %128, %129 : vector<1x8x8xf32>
    %cst_86 = arith.constant dense<0xFF800000> : vector<1x8xf32>
    %131 = vector.multi_reduction <maximumf>, %130, %cst_86 [2] : vector<1x8x8xf32> to vector<1x8xf32>
    %132 = vector.shape_cast %131 : vector<1x8xf32> to vector<1x8x1xf32>
    %133 = vector.broadcast %132 : vector<1x8x1xf32> to vector<1x8x8xf32>
    %134 = arith.subf %130, %133 : vector<1x8x8xf32>
    %135 = math.exp %134 : vector<1x8x8xf32>
    %cst_87 = arith.constant dense<0.000000e+00> : vector<1x8xf32>
    %136 = vector.multi_reduction <add>, %135, %cst_87 [2] : vector<1x8x8xf32> to vector<1x8xf32>
    %137 = vector.shape_cast %136 : vector<1x8xf32> to vector<1x8x1xf32>
    %138 = tpu.reciprocal %137 : vector<1x8x1xf32> -> vector<1x8x1xf32>
    %139 = vector.broadcast %138 : vector<1x8x1xf32> to vector<1x8x8xf32>
    %140 = arith.mulf %135, %139 : vector<1x8x8xf32>
    %141 = arith.truncf %140 : vector<1x8x8xf32> to vector<1x8x8xbf16>
    %c0_88 = arith.constant 0 : index
    %c3 = arith.constant 3 : index
    %c0_89 = arith.constant 0 : index
    %c0_90 = arith.constant 0 : index
    %142 = vector.load %arg19[%c0_88, %c3, %c0_89, %c0_90] : memref<1x4x8x8xbf16, #tpu.memory_space<vmem>>, vector<1x1x8x8xbf16>
    %143 = vector.shape_cast %142 : vector<1x1x8x8xbf16> to vector<1x8x8xbf16>
    %144 = vector.shape_cast %141 : vector<1x8x8xbf16> to vector<1x1x8x8xbf16>
    tpu.vector_store %arg19[%c0_88, %c3, %c0_89, %c0_90], %144 {strides = array<i32>} : memref<1x4x8x8xbf16, #tpu.memory_space<vmem>>, vector<1x1x8x8xbf16>,
    %145 = arith.truncf %140 : vector<1x8x8xf32> to vector<1x8x8xbf16>
    "tpu.trace_start"() <{level = 10 : i32, message = "bqk,bkd->bqd"}> : () -> ()
    %cst_91 = arith.constant dense<0.000000e+00> : vector<1x8x8xf32>
    %146 = tpu.matmul %145, %125, %cst_91 {dimension_numbers = #tpu.dot_dimension_numbers<[2], [1], [1], [2], [0, 0, 0, 1, 1, 2], [0], [0]>} : vector<1x8x8xbf16>, vector<1x8x8xbf16>, vector<1x8x8xf32> -> vector<1x8x8xf32>
    "tpu.trace_stop"() : () -> ()
    %147 = arith.truncf %146 : vector<1x8x8xf32> to vector<1x8x8xbf16>
    %c0_92 = arith.constant 0 : index
    %c0_93 = arith.constant 0 : index
    %c24_94 = arith.constant 24 : index
    %148 = vector.load %arg22[%c0_92, %c0_93, %c24_94] : memref<1x8x32xbf16, #tpu.memory_space<vmem>>, vector<1x8x8xbf16>
    tpu.vector_store %arg22[%c0_92, %c0_93, %c24_94], %147 {strides = array<i32>} : memref<1x8x32xbf16, #tpu.memory_space<vmem>>, vector<1x8x8xbf16>,
    %c0_95 = arith.constant 0 : index
    %c0_96 = arith.constant 0 : index
    %c0_97 = arith.constant 0 : index
    %149 = vector.load %arg22[%c0_95, %c0_96, %c0_97] : memref<1x8x32xbf16, #tpu.memory_space<vmem>>, vector<1x8x32xbf16>
    %150 = vector.shape_cast %149 : vector<1x8x32xbf16> to vector<8x32xbf16>
    %c0_98 = arith.constant 0 : index
    %c0_99 = arith.constant 0 : index
    %c0_100 = arith.constant 0 : index
    %151 = vector.load %arg8[%c0_98, %c0_99, %c0_100] : memref<1x32x32xbf16, #tpu.memory_space<vmem>>, vector<1x32x32xbf16>
    %152 = vector.shape_cast %151 : vector<1x32x32xbf16> to vector<32x32xbf16>
    %cst_101 = arith.constant dense<0.000000e+00> : vector<8x32xf32>
    %153 = tpu.matmul %150, %152, %cst_101 {dimension_numbers = #tpu.dot_dimension_numbers<[1], [0], [0], [1], [0, 0, 1, 1], [], []>} : vector<8x32xbf16>, vector<32x32xbf16>, vector<8x32xf32> -> vector<8x32xf32>
    %c0_102 = arith.constant 0 : index
    %c0_103 = arith.constant 0 : index
    %c0_104 = arith.constant 0 : index
    %154 = vector.load %arg9[%c0_102, %c0_103, %c0_104] : memref<1x1x32xf32, #tpu.memory_space<vmem>>, vector<1x1x32xf32>
    %155 = vector.shape_cast %154 : vector<1x1x32xf32> to vector<1x32xf32>
    %156 = vector.broadcast %155 : vector<1x32xf32> to vector<8x32xf32>
    %157 = arith.addf %153, %156 : vector<8x32xf32>
    %158 = vector.shape_cast %157 : vector<8x32xf32> to vector<1x8x32xf32>
    %159 = arith.addf %3, %158 : vector<1x8x32xf32>
    %c0_105 = arith.constant 0 : index
    %c0_106 = arith.constant 0 : index
    %c0_107 = arith.constant 0 : index
    %160 = vector.load %arg10[%c0_105, %c0_106, %c0_107] : memref<1x1x32xf32, #tpu.memory_space<vmem>>, vector<1x1x32xf32>
    %161 = vector.shape_cast %160 : vector<1x1x32xf32> to vector<1x32xf32>
    %c0_108 = arith.constant 0 : index
    %c0_109 = arith.constant 0 : index
    %c0_110 = arith.constant 0 : index
    %162 = vector.load %arg11[%c0_108, %c0_109, %c0_110] : memref<1x1x32xf32, #tpu.memory_space<vmem>>, vector<1x1x32xf32>
    %163 = vector.shape_cast %162 : vector<1x1x32xf32> to vector<1x32xf32>
    %cst_111 = arith.constant dense<0.000000e+00> : vector<1x8xf32>
    %164 = vector.multi_reduction <add>, %159, %cst_111 [2] : vector<1x8x32xf32> to vector<1x8xf32>
    %165 = vector.shape_cast %164 : vector<1x8xf32> to vector<1x8x1xf32>
    %cst_112 = arith.constant 3.200000e+01 : f32
    %166 = vector.broadcast %cst_112 : f32 to vector<1x8x1xf32>
    %167 = arith.divf %165, %166 : vector<1x8x1xf32>
    %168 = vector.broadcast %167 : vector<1x8x1xf32> to vector<1x8x32xf32>
    %169 = arith.subf %159, %168 : vector<1x8x32xf32>
    %170 = arith.mulf %169, %169 : vector<1x8x32xf32>
    %cst_113 = arith.constant dense<0.000000e+00> : vector<1x8xf32>
    %171 = vector.multi_reduction <add>, %170, %cst_113 [2] : vector<1x8x32xf32> to vector<1x8xf32>
    %172 = vector.shape_cast %171 : vector<1x8xf32> to vector<1x8x1xf32>
    %cst_114 = arith.constant 3.200000e+01 : f32
    %173 = vector.broadcast %cst_114 : f32 to vector<1x8x1xf32>
    %174 = arith.divf %172, %173 : vector<1x8x1xf32>
    %175 = vector.broadcast %167 : vector<1x8x1xf32> to vector<1x8x32xf32>
    %176 = arith.subf %159, %175 : vector<1x8x32xf32>
    %cst_115 = arith.constant 9.99999974E-6 : f32
    %177 = vector.broadcast %cst_115 : f32 to vector<1x8x1xf32>
    %178 = arith.addf %174, %177 : vector<1x8x1xf32>
    %179 = math.rsqrt %178 : vector<1x8x1xf32>
    %180 = vector.broadcast %179 : vector<1x8x1xf32> to vector<1x8x32xf32>
    %181 = arith.mulf %176, %180 : vector<1x8x32xf32>
    %182 = vector.shape_cast %161 : vector<1x32xf32> to vector<1x1x32xf32>
    %183 = vector.broadcast %182 : vector<1x1x32xf32> to vector<1x8x32xf32>
    %184 = arith.mulf %181, %183 : vector<1x8x32xf32>
    %185 = vector.shape_cast %163 : vector<1x32xf32> to vector<1x1x32xf32>
    %186 = vector.broadcast %185 : vector<1x1x32xf32> to vector<1x8x32xf32>
    %187 = arith.addf %184, %186 : vector<1x8x32xf32>
    %188 = vector.shape_cast %187 : vector<1x8x32xf32> to vector<8x32xf32>
    %189 = arith.truncf %188 : vector<8x32xf32> to vector<8x32xbf16>
    %c0_116 = arith.constant 0 : index
    %c0_117 = arith.constant 0 : index
    %c0_118 = arith.constant 0 : index
    %190 = vector.load %arg12[%c0_116, %c0_117, %c0_118] : memref<1x32x128xbf16, #tpu.memory_space<vmem>>, vector<1x32x128xbf16>
    %191 = vector.shape_cast %190 : vector<1x32x128xbf16> to vector<32x128xbf16>
    %cst_119 = arith.constant dense<0.000000e+00> : vector<8x128xf32>
    %192 = tpu.matmul %189, %191, %cst_119 {dimension_numbers = #tpu.dot_dimension_numbers<[1], [0], [0], [1], [0, 0, 1, 1], [], []>} : vector<8x32xbf16>, vector<32x128xbf16>, vector<8x128xf32> -> vector<8x128xf32>
    %c0_120 = arith.constant 0 : index
    %c0_121 = arith.constant 0 : index
    %c0_122 = arith.constant 0 : index
    %193 = vector.load %arg13[%c0_120, %c0_121, %c0_122] : memref<1x1x128xf32, #tpu.memory_space<vmem>>, vector<1x1x128xf32>
    %194 = vector.shape_cast %193 : vector<1x1x128xf32> to vector<1x128xf32>
    %195 = vector.broadcast %194 : vector<1x128xf32> to vector<8x128xf32>
    %196 = arith.addf %192, %195 : vector<8x128xf32>
    %cst_123 = arith.constant 5.000000e-01 : f32
    %197 = vector.broadcast %cst_123 : f32 to vector<8x128xf32>
    %198 = arith.mulf %197, %196 : vector<8x128xf32>
    %cst_124 = arith.constant 4.471500e-02 : f32
    %199 = vector.broadcast %cst_124 : f32 to vector<8x128xf32>
    %200 = arith.mulf %199, %196 : vector<8x128xf32>
    %201 = arith.mulf %200, %196 : vector<8x128xf32>
    %202 = arith.mulf %201, %196 : vector<8x128xf32>
    %203 = arith.addf %196, %202 : vector<8x128xf32>
    %cst_125 = arith.constant 0.797884583 : f32
    %204 = vector.broadcast %cst_125 : f32 to vector<8x128xf32>
    %205 = arith.mulf %204, %203 : vector<8x128xf32>
    %206 = math.tanh %205 : vector<8x128xf32>
    %cst_126 = arith.constant 1.000000e+00 : f32
    %207 = vector.broadcast %cst_126 : f32 to vector<8x128xf32>
    %208 = arith.addf %207, %206 : vector<8x128xf32>
    %209 = arith.mulf %198, %208 : vector<8x128xf32>
    %210 = arith.truncf %209 : vector<8x128xf32> to vector<8x128xbf16>
    %c0_127 = arith.constant 0 : index
    %c0_128 = arith.constant 0 : index
    %c0_129 = arith.constant 0 : index
    %211 = vector.load %arg14[%c0_127, %c0_128, %c0_129] : memref<1x128x32xbf16, #tpu.memory_space<vmem>>, vector<1x128x32xbf16>
    %212 = vector.shape_cast %211 : vector<1x128x32xbf16> to vector<128x32xbf16>
    %cst_130 = arith.constant dense<0.000000e+00> : vector<8x32xf32>
    %213 = tpu.matmul %210, %212, %cst_130 {dimension_numbers = #tpu.dot_dimension_numbers<[1], [0], [0], [1], [0, 0, 1, 1], [], []>} : vector<8x128xbf16>, vector<128x32xbf16>, vector<8x32xf32> -> vector<8x32xf32>
    %c0_131 = arith.constant 0 : index
    %c0_132 = arith.constant 0 : index
    %c0_133 = arith.constant 0 : index
    %214 = vector.load %arg15[%c0_131, %c0_132, %c0_133] : memref<1x1x32xf32, #tpu.memory_space<vmem>>, vector<1x1x32xf32>
    %215 = vector.shape_cast %214 : vector<1x1x32xf32> to vector<1x32xf32>
    %216 = vector.broadcast %215 : vector<1x32xf32> to vector<8x32xf32>
    %217 = arith.addf %213, %216 : vector<8x32xf32>
    %218 = vector.shape_cast %217 : vector<8x32xf32> to vector<1x8x32xf32>
    %219 = arith.addf %159, %218 : vector<1x8x32xf32>
    %c0_134 = arith.constant 0 : index
    %c0_135 = arith.constant 0 : index
    %c0_136 = arith.constant 0 : index
    %220 = vector.load %arg20[%c0_134, %c0_135, %c0_136] : memref<1x8x32xf32, #tpu.memory_space<vmem>>, vector<1x8x32xf32>
    tpu.vector_store %arg20[%c0_134, %c0_135, %c0_136], %219 {strides = array<i32>} : memref<1x8x32xf32, #tpu.memory_space<vmem>>, vector<1x8x32xf32>,
    %c1_i32 = arith.constant 1 : i32
    %221 = arith.cmpi eq, %arg1, %c1_i32 : i32
    %222 = arith.extui %221 : i1 to i32
    %c0_i32_137 = arith.constant 0 : i32
    %223 = arith.cmpi ne, %222, %c0_i32_137 : i32
    scf.if %223 {
      %c0_138 = arith.constant 0 : index
      %c0_139 = arith.constant 0 : index
      %224 = vector.load %arg16[%c0_138, %c0_139] : memref<1x32xf32, #tpu.memory_space<vmem>>, vector<1x32xf32>
      %c0_140 = arith.constant 0 : index
      %c0_141 = arith.constant 0 : index
      %225 = vector.load %arg17[%c0_140, %c0_141] : memref<1x32xf32, #tpu.memory_space<vmem>>, vector<1x32xf32>
      %cst_142 = arith.constant dense<0.000000e+00> : vector<1x8xf32>
      %226 = vector.multi_reduction <add>, %219, %cst_142 [2] : vector<1x8x32xf32> to vector<1x8xf32>
      %227 = vector.shape_cast %226 : vector<1x8xf32> to vector<1x8x1xf32>
      %cst_143 = arith.constant 3.200000e+01 : f32
      %228 = vector.broadcast %cst_143 : f32 to vector<1x8x1xf32>
      %229 = arith.divf %227, %228 : vector<1x8x1xf32>
      %230 = vector.broadcast %229 : vector<1x8x1xf32> to vector<1x8x32xf32>
      %231 = arith.subf %219, %230 : vector<1x8x32xf32>
      %232 = arith.mulf %231, %231 : vector<1x8x32xf32>
      %cst_144 = arith.constant dense<0.000000e+00> : vector<1x8xf32>
      %233 = vector.multi_reduction <add>, %232, %cst_144 [2] : vector<1x8x32xf32> to vector<1x8xf32>
      %234 = vector.shape_cast %233 : vector<1x8xf32> to vector<1x8x1xf32>
      %cst_145 = arith.constant 3.200000e+01 : f32
      %235 = vector.broadcast %cst_145 : f32 to vector<1x8x1xf32>
      %236 = arith.divf %234, %235 : vector<1x8x1xf32>
      %237 = vector.broadcast %229 : vector<1x8x1xf32> to vector<1x8x32xf32>
      %238 = arith.subf %219, %237 : vector<1x8x32xf32>
      %cst_146 = arith.constant 9.99999974E-6 : f32
      %239 = vector.broadcast %cst_146 : f32 to vector<1x8x1xf32>
      %240 = arith.addf %236, %239 : vector<1x8x1xf32>
      %241 = math.rsqrt %240 : vector<1x8x1xf32>
      %242 = vector.broadcast %241 : vector<1x8x1xf32> to vector<1x8x32xf32>
      %243 = arith.mulf %238, %242 : vector<1x8x32xf32>
      %244 = vector.shape_cast %224 : vector<1x32xf32> to vector<1x1x32xf32>
      %245 = vector.broadcast %244 : vector<1x1x32xf32> to vector<1x8x32xf32>
      %246 = arith.mulf %243, %245 : vector<1x8x32xf32>
      %247 = vector.shape_cast %225 : vector<1x32xf32> to vector<1x1x32xf32>
      %248 = vector.broadcast %247 : vector<1x1x32xf32> to vector<1x8x32xf32>
      %249 = arith.addf %246, %248 : vector<1x8x32xf32>
      %c0_147 = arith.constant 0 : index
      %c0_148 = arith.constant 0 : index
      %c0_149 = arith.constant 0 : index
      %250 = vector.load %arg18[%c0_147, %c0_148, %c0_149] : memref<1x8x32xf32, #tpu.memory_space<vmem>>, vector<1x8x32xf32>
      tpu.vector_store %arg18[%c0_147, %c0_148, %c0_149], %249 {strides = array<i32>} : memref<1x8x32xf32, #tpu.memory_space<vmem>>, vector<1x8x32xf32>,
    } else {
    }
    return
  }
  func.func @transform_0(%arg0: i32, %arg1: i32) -> (i32, i32) {
    %c0_i32 = arith.constant 0 : i32
    %c0_i32_0 = arith.constant 0 : i32
    %c0_i32_1 = arith.constant 0 : i32
    return %c0_i32, %c0_i32_0 : i32, i32
  }
  func.func @transform_1(%arg0: i32, %arg1: i32) -> (i32, i32, i32) {
    %c0_i32 = arith.constant 0 : i32
    %c0_i32_0 = arith.constant 0 : i32
    %c0_i32_1 = arith.constant 0 : i32
    return %arg0, %c0_i32, %c0_i32_0 : i32, i32, i32
  }
  func.func @transform_2(%arg0: i32, %arg1: i32) -> (i32, i32, i32) {
    %c0_i32 = arith.constant 0 : i32
    %c0_i32_0 = arith.constant 0 : i32
    %c0_i32_1 = arith.constant 0 : i32
    return %arg1, %c0_i32, %c0_i32_0 : i32, i32, i32
  }
  func.func @transform_3(%arg0: i32, %arg1: i32) -> (i32, i32, i32) {
    %c0_i32 = arith.constant 0 : i32
    %c0_i32_0 = arith.constant 0 : i32
    %c0_i32_1 = arith.constant 0 : i32
    return %arg1, %c0_i32, %c0_i32_0 : i32, i32, i32
  }
  func.func @transform_4(%arg0: i32, %arg1: i32) -> (i32, i32, i32) {
    %c0_i32 = arith.constant 0 : i32
    %c0_i32_0 = arith.constant 0 : i32
    %c0_i32_1 = arith.constant 0 : i32
    return %arg1, %c0_i32, %c0_i32_0 : i32, i32, i32
  }
  func.func @transform_5(%arg0: i32, %arg1: i32) -> (i32, i32, i32) {
    %c0_i32 = arith.constant 0 : i32
    %c0_i32_0 = arith.constant 0 : i32
    %c0_i32_1 = arith.constant 0 : i32
    return %arg1, %c0_i32, %c0_i32_0 : i32, i32, i32
  }
  func.func @transform_6(%arg0: i32, %arg1: i32) -> (i32, i32, i32) {
    %c0_i32 = arith.constant 0 : i32
    %c0_i32_0 = arith.constant 0 : i32
    %c0_i32_1 = arith.constant 0 : i32
    return %arg1, %c0_i32, %c0_i32_0 : i32, i32, i32
  }
  func.func @transform_7(%arg0: i32, %arg1: i32) -> (i32, i32, i32) {
    %c0_i32 = arith.constant 0 : i32
    %c0_i32_0 = arith.constant 0 : i32
    %c0_i32_1 = arith.constant 0 : i32
    return %arg1, %c0_i32, %c0_i32_0 : i32, i32, i32
  }
  func.func @transform_8(%arg0: i32, %arg1: i32) -> (i32, i32, i32) {
    %c0_i32 = arith.constant 0 : i32
    %c0_i32_0 = arith.constant 0 : i32
    %c0_i32_1 = arith.constant 0 : i32
    return %arg1, %c0_i32, %c0_i32_0 : i32, i32, i32
  }
  func.func @transform_9(%arg0: i32, %arg1: i32) -> (i32, i32, i32) {
    %c0_i32 = arith.constant 0 : i32
    %c0_i32_0 = arith.constant 0 : i32
    %c0_i32_1 = arith.constant 0 : i32
    return %arg1, %c0_i32, %c0_i32_0 : i32, i32, i32
  }
  func.func @transform_10(%arg0: i32, %arg1: i32) -> (i32, i32, i32) {
    %c0_i32 = arith.constant 0 : i32
    %c0_i32_0 = arith.constant 0 : i32
    %c0_i32_1 = arith.constant 0 : i32
    return %arg1, %c0_i32, %c0_i32_0 : i32, i32, i32
  }
  func.func @transform_11(%arg0: i32, %arg1: i32) -> (i32, i32, i32) {
    %c0_i32 = arith.constant 0 : i32
    %c0_i32_0 = arith.constant 0 : i32
    %c0_i32_1 = arith.constant 0 : i32
    return %arg1, %c0_i32, %c0_i32_0 : i32, i32, i32
  }
  func.func @transform_12(%arg0: i32, %arg1: i32) -> (i32, i32, i32) {
    %c0_i32 = arith.constant 0 : i32
    %c0_i32_0 = arith.constant 0 : i32
    %c0_i32_1 = arith.constant 0 : i32
    return %arg1, %c0_i32, %c0_i32_0 : i32, i32, i32
  }
  func.func @transform_13(%arg0: i32, %arg1: i32) -> (i32, i32, i32) {
    %c0_i32 = arith.constant 0 : i32
    %c0_i32_0 = arith.constant 0 : i32
    %c0_i32_1 = arith.constant 0 : i32
    return %arg1, %c0_i32, %c0_i32_0 : i32, i32, i32
  }
  func.func @transform_14(%arg0: i32, %arg1: i32) -> (i32, i32) {
    %c0_i32 = arith.constant 0 : i32
    %c0_i32_0 = arith.constant 0 : i32
    %c0_i32_1 = arith.constant 0 : i32
    return %c0_i32, %c0_i32_0 : i32, i32
  }
  func.func @transform_15(%arg0: i32, %arg1: i32) -> (i32, i32) {
    %c0_i32 = arith.constant 0 : i32
    %c0_i32_0 = arith.constant 0 : i32
    %c0_i32_1 = arith.constant 0 : i32
    return %c0_i32, %c0_i32_0 : i32, i32
  }
  func.func @transform_16(%arg0: i32, %arg1: i32) -> (i32, i32, i32) {
    %c0_i32 = arith.constant 0 : i32
    %c0_i32_0 = arith.constant 0 : i32
    %c0_i32_1 = arith.constant 0 : i32
    return %arg0, %c0_i32, %c0_i32_0 : i32, i32, i32
  }
  func.func @transform_17(%arg0: i32, %arg1: i32) -> (i32, i32, i32, i32) {
    %c2_i32 = arith.constant 2 : i32
    %0 = arith.muli %arg1, %c2_i32 : i32
    %1 = arith.addi %0, %arg0 : i32
    %c0_i32 = arith.constant 0 : i32
    %c0_i32_0 = arith.constant 0 : i32
    %c0_i32_1 = arith.constant 0 : i32
    %c0_i32_2 = arith.constant 0 : i32
    return %1, %c0_i32, %c0_i32_0, %c0_i32_1 : i32, i32, i32, i32
  }
}

</mosaic_0001>

<llo_original>
// kernel: tpu_custom_call.1
$region0: #{tpu_custom_call.1}
  #allocation0 [shape = 'u32[]', space=smem, size = 0x4, offset = 0x4, fixed_abs, tag = 'smem constant byte address 0x4 - core index']
  #allocation1 [shape = 'u32[144,128]{1,0:T(1,128)}', space=vmem, size = 0x12000, scoped, tag = 'internal scratch']
  #allocation2 [shape = 'f32[1,8,32]{2,1,0:T(8,128)}', space=vmem, size = 0x1000, scoped, tag = 'scratch operand']
  #allocation3 [shape = 'bf16[1,8,96]{2,1,0:T(8,128)(2,1)}', space=vmem, size = 0x800, scoped, tag = 'scratch operand']
  #allocation4 [shape = 'bf16[1,8,32]{2,1,0:T(8,128)(2,1)}', space=vmem, size = 0x800, scoped, tag = 'scratch operand']
  %s0 = inlined_call_operand.vmem [shape: f32[8,8], index: 0, kind: input, shape index: {}]
  %s1 = inlined_call_operand.vmem [shape: bf16[2,8,32], index: 1, kind: input, shape index: {}]
  %s2 = inlined_call_operand.vmem [shape: f32[2,1,32], index: 2, kind: input, shape index: {}]
  %s3 = inlined_call_operand.vmem [shape: f32[2,1,32], index: 3, kind: input, shape index: {}]
  %s4 = inlined_call_operand.vmem [shape: bf16[2,32,96], index: 4, kind: input, shape index: {}]
  %s5 = inlined_call_operand.vmem [shape: f32[2,1,96], index: 5, kind: input, shape index: {}]
  %s6 = inlined_call_operand.vmem [shape: bf16[2,32,32], index: 6, kind: input, shape index: {}]
  %s7 = inlined_call_operand.vmem [shape: f32[2,1,32], index: 7, kind: input, shape index: {}]
  %s8 = inlined_call_operand.vmem [shape: f32[2,1,32], index: 8, kind: input, shape index: {}]
  %s9 = inlined_call_operand.vmem [shape: f32[2,1,32], index: 9, kind: input, shape index: {}]
  %s10 = inlined_call_operand.vmem [shape: bf16[2,32,128], index: 10, kind: input, shape index: {}]
  %s11 = inlined_call_operand.vmem [shape: f32[2,1,128], index: 11, kind: input, shape index: {}]
  %s12 = inlined_call_operand.vmem [shape: bf16[2,128,32], index: 12, kind: input, shape index: {}]
  %s13 = inlined_call_operand.vmem [shape: f32[2,1,32], index: 13, kind: input, shape index: {}]
  %s14 = inlined_call_operand.vmem [shape: f32[1,32], index: 14, kind: input, shape index: {}]
  %s15 = inlined_call_operand.vmem [shape: f32[1,32], index: 15, kind: input, shape index: {}]
  %s16 = inlined_call_operand.hbm [shape: f32[2,8,32], index: 16, kind: output, shape index: {0}]
  %s17 = inlined_call_operand.hbm [shape: bf16[4,4,8,8], index: 17, kind: output, shape index: {1}]
  %18 = xla_tuple %s16, %s17
  %s19 = sld [smem:[#allocation0]]
  $region113: #{tpu_custom_call.1} parent=0
    _
  %s21 = ssub.s32 1, %s19
  %s22 = scalar_select 0, %s21, %s19
  $region1: #{tpu_custom_call.1} parent=0
    #allocation5 [shape = 'u8[8192]{0}', space=vmem, size = 0x2000, scoped, tag = 'output window, operand 0']
    #allocation6 [shape = 's32[2]{0}', space=sflag, size = 0x8, scoped, tag = 'scoped memory for tpu_custom_call.1']
    #allocation7 [shape = 'u8[16384]{0}', space=vmem, size = 0x4000, scoped, tag = 'output window, operand 1']
    #allocation8 [shape = 's32[2]{0}', space=sflag, size = 0x8, scoped, tag = 'scoped memory for tpu_custom_call.1']
    %23 = vsyncpa [#allocation6], 0
    %s24 = scalar_lea.sflag [#allocation6], 1
    %25 = vsyncpa %s24, 0
    %26 = vsyncpa [#allocation8], 0
    %s27 = scalar_lea.sflag [#allocation8], 1
    %28 = vsyncpa %s27, 0
    loop: start=0, step=1, limit=6
    $region2: #{tpu_custom_call.1} parent=1 // loop_pre_header
      _
    $region3: #{tpu_custom_call.1} parent=1 // loop_header
      %s30 = sphi 0, %s34
      %p31 = scmp.ge.s32.totalorder %s30, 6
      %s37 = sphi 0, %s49
      %s38 = sphi 0, %s45
      %s39 = sphi 0, %s37
      %s40 = sphi 0, %s38
      %s41 = sphi 0, %s39
      %s42 = sphi 0, %s40
      %s50 = sphi 0, %s50
      %s52 = sphi 0, %s50
      %s53 = sphi 0, %s52
      %s67 = sphi 0, %s53
      %s73 = sphi 0, %s75
      %s76 = sphi 0, %s73
      %s77 = sphi 0, %s76
      %s93 = sphi 0, %s77
      %s99 = sphi 0, %s101
      %s102 = sphi 0, %s99
      %s103 = sphi 0, %s102
      %s119 = sphi 0, %s103
      %s125 = sphi 0, %s127
      %s128 = sphi 0, %s125
      %s129 = sphi 0, %s128
      %s145 = sphi 0, %s129
      %s151 = sphi 0, %s153
      %s154 = sphi 0, %s151
      %s155 = sphi 0, %s154
      %s171 = sphi 0, %s155
      %s177 = sphi 0, %s179
      %s180 = sphi 0, %s177
      %s181 = sphi 0, %s180
      %s197 = sphi 0, %s181
      %s203 = sphi 0, %s205
      %s206 = sphi 0, %s203
      %s207 = sphi 0, %s206
      %s223 = sphi 0, %s207
      %s229 = sphi 0, %s231
      %s232 = sphi 0, %s229
      %s233 = sphi 0, %s232
      %s249 = sphi 0, %s233
      %s255 = sphi 0, %s257
      %s258 = sphi 0, %s255
      %s259 = sphi 0, %s258
      %s275 = sphi 0, %s259
      %s281 = sphi 0, %s283
      %s284 = sphi 0, %s281
      %s285 = sphi 0, %s284
      %s301 = sphi 0, %s285
      %s307 = sphi 0, %s309
      %s310 = sphi 0, %s307
      %s311 = sphi 0, %s310
      %s327 = sphi 0, %s311
      %s333 = sphi 0, %s335
      %s336 = sphi 0, %s333
      %s337 = sphi 0, %s336
      %s353 = sphi 0, %s337
      %s359 = sphi 0, %s361
      %s362 = sphi 0, %s359
      %s363 = sphi 0, %s362
      %s379 = sphi 0, %s363
      %s385 = sphi 0, %s387
      %s388 = sphi 0, %s385
      %s389 = sphi 0, %s388
      %s405 = sphi 0, %s389
      %s409 = sphi 0, %s409
      %s411 = sphi 0, %s409
      %s412 = sphi 0, %s411
      %s426 = sphi 0, %s412
      %s430 = sphi 0, %s430
      %s432 = sphi 0, %s430
      %s433 = sphi 0, %s432
      %s447 = sphi 0, %s433
      %s453 = sphi 0, %s455
      %s456 = sphi 0, %s453
      %s457 = sphi 0, %s456
      %s473 = sphi 0, %s457
      %s483 = sphi 0, %s485
      %s486 = sphi 0, %s483
      %s487 = sphi 0, %s486
      %s503 = sphi 0, %s487
    $region4: #{tpu_custom_call.1} parent=1 // loop_header_branch
      %33 = sbr.rel (%p31) target = $region8
    $region5: #{tpu_custom_call.1} parent=1 // loop_body
      %s35 = ssub.s32 %s30, 1
      %s36 = ssub.s32 %s30, 2
      %s43 = sadd.s32 1, %s38
      %p44 = scmp.ge.s32.totalorder %s43, 2
      %s45 = scalar_select %p44, 0, %s43
      %s46 = sadd.s32 1, %s37
      %s47 = scalar_select %p44, %s46, %s37
      %p48 = scmp.ge.s32.totalorder %s47, 2
      %s49 = scalar_select %p48, 0, %s47
      %s51 = sadd.s32 %s50, 1
      %p54 = scmp.eq.s32.totalorder %s30, 3
      %p55 = scmp.ne.s32.totalorder %s50, %s52
      %p56 = scmp.eq.s32.totalorder %s30, 0
      %p57 = por %p55, %p56
      %p58 = scmp.ne.s32.totalorder %s50, %s52
      %p59 = scmp.eq.s32.totalorder %s35, 3
      %p60 = por %p58, %p59
      %p61 = scmp.ne.s32.totalorder %s52, %s53
      %p62 = scmp.eq.s32.totalorder %s35, 0
      %p63 = por %p61, %p62
      %p64 = scmp.ne.s32.totalorder %s52, %s53
      %p65 = scmp.eq.s32.totalorder %s36, 3
      %p66 = por %p64, %p65
      %p68 = scmp.ne.s32.totalorder %s53, %s67
      %p69 = scmp.eq.s32.totalorder %s36, 0
      %p70 = por %p68, %p69
      %s71 = ssub.s32 %s37, %s49
      %p72 = scmp.eq.s32.totalorder %s71, 0
      %s74 = sadd.s32 %s73, 1
      %s75 = scalar_select %p72, %s73, %s74
      %p78 = pneg %p72
      %p79 = scmp.eq.s32.totalorder %s30, 3
      %p80 = por %p78, %p79
      %p81 = scmp.ne.s32.totalorder %s73, %s76
      %p82 = scmp.eq.s32.totalorder %s30, 0
      %p83 = por %p81, %p82
      %p84 = scmp.ne.s32.totalorder %s73, %s76
      %p85 = scmp.eq.s32.totalorder %s35, 3
      %p86 = por %p84, %p85
      %p87 = scmp.ne.s32.totalorder %s76, %s77
      %p88 = scmp.eq.s32.totalorder %s35, 0
      %p89 = por %p87, %p88
      %p90 = scmp.ne.s32.totalorder %s76, %s77
      %p91 = scmp.eq.s32.totalorder %s36, 3
      %p92 = por %p90, %p91
      %p94 = scmp.ne.s32.totalorder %s77, %s93
      %p95 = scmp.eq.s32.totalorder %s36, 0
      %p96 = por %p94, %p95
      %s97 = ssub.s32 %s38, %s45
      %p98 = scmp.eq.s32.totalorder %s97, 0
      %s100 = sadd.s32 %s99, 1
      %s101 = scalar_select %p98, %s99, %s100
      %p104 = pneg %p98
      %p105 = scmp.eq.s32.totalorder %s30, 3
      %p106 = por %p104, %p105
      %p107 = scmp.ne.s32.totalorder %s99, %s102
      %p108 = scmp.eq.s32.totalorder %s30, 0
      %p109 = por %p107, %p108
      %p110 = scmp.ne.s32.totalorder %s99, %s102
      %p111 = scmp.eq.s32.totalorder %s35, 3
      %p112 = por %p110, %p111
      %p113 = scmp.ne.s32.totalorder %s102, %s103
      %p114 = scmp.eq.s32.totalorder %s35, 0
      %p115 = por %p113, %p114
      %p116 = scmp.ne.s32.totalorder %s102, %s103
      %p117 = scmp.eq.s32.totalorder %s36, 3
      %p118 = por %p116, %p117
      %p120 = scmp.ne.s32.totalorder %s103, %s119
      %p121 = scmp.eq.s32.totalorder %s36, 0
      %p122 = por %p120, %p121
      %s123 = ssub.s32 %s38, %s45
      %p124 = scmp.eq.s32.totalorder %s123, 0
      %s126 = sadd.s32 %s125, 1
      %s127 = scalar_select %p124, %s125, %s126
      %p130 = pneg %p124
      %p131 = scmp.eq.s32.totalorder %s30, 3
      %p132 = por %p130, %p131
      %p133 = scmp.ne.s32.totalorder %s125, %s128
      %p134 = scmp.eq.s32.totalorder %s30, 0
      %p135 = por %p133, %p134
      %p136 = scmp.ne.s32.totalorder %s125, %s128
      %p137 = scmp.eq.s32.totalorder %s35, 3
      %p138 = por %p136, %p137
      %p139 = scmp.ne.s32.totalorder %s128, %s129
      %p140 = scmp.eq.s32.totalorder %s35, 0
      %p141 = por %p139, %p140
      %p142 = scmp.ne.s32.totalorder %s128, %s129
      %p143 = scmp.eq.s32.totalorder %s36, 3
      %p144 = por %p142, %p143
      %p146 = scmp.ne.s32.totalorder %s129, %s145
      %p147 = scmp.eq.s32.totalorder %s36, 0
      %p148 = por %p146, %p147
      %s149 = ssub.s32 %s38, %s45
      %p150 = scmp.eq.s32.totalorder %s149, 0
      %s152 = sadd.s32 %s151, 1
      %s153 = scalar_select %p150, %s151, %s152
      %p156 = pneg %p150
      %p157 = scmp.eq.s32.totalorder %s30, 3
      %p158 = por %p156, %p157
      %p159 = scmp.ne.s32.totalorder %s151, %s154
      %p160 = scmp.eq.s32.totalorder %s30, 0
      %p161 = por %p159, %p160
      %p162 = scmp.ne.s32.totalorder %s151, %s154
      %p163 = scmp.eq.s32.totalorder %s35, 3
      %p164 = por %p162, %p163
      %p165 = scmp.ne.s32.totalorder %s154, %s155
      %p166 = scmp.eq.s32.totalorder %s35, 0
      %p167 = por %p165, %p166
      %p168 = scmp.ne.s32.totalorder %s154, %s155
      %p169 = scmp.eq.s32.totalorder %s36, 3
      %p170 = por %p168, %p169
      %p172 = scmp.ne.s32.totalorder %s155, %s171
      %p173 = scmp.eq.s32.totalorder %s36, 0
      %p174 = por %p172, %p173
      %s175 = ssub.s32 %s38, %s45
      %p176 = scmp.eq.s32.totalorder %s175, 0
      %s178 = sadd.s32 %s177, 1
      %s179 = scalar_select %p176, %s177, %s178
      %p182 = pneg %p176
      %p183 = scmp.eq.s32.totalorder %s30, 3
      %p184 = por %p182, %p183
      %p185 = scmp.ne.s32.totalorder %s177, %s180
      %p186 = scmp.eq.s32.totalorder %s30, 0
      %p187 = por %p185, %p186
      %p188 = scmp.ne.s32.totalorder %s177, %s180
      %p189 = scmp.eq.s32.totalorder %s35, 3
      %p190 = por %p188, %p189
      %p191 = scmp.ne.s32.totalorder %s180, %s181
      %p192 = scmp.eq.s32.totalorder %s35, 0
      %p193 = por %p191, %p192
      %p194 = scmp.ne.s32.totalorder %s180, %s181
      %p195 = scmp.eq.s32.totalorder %s36, 3
      %p196 = por %p194, %p195
      %p198 = scmp.ne.s32.totalorder %s181, %s197
      %p199 = scmp.eq.s32.totalorder %s36, 0
      %p200 = por %p198, %p199
      %s201 = ssub.s32 %s38, %s45
      %p202 = scmp.eq.s32.totalorder %s201, 0
      %s204 = sadd.s32 %s203, 1
      %s205 = scalar_select %p202, %s203, %s204
      %p208 = pneg %p202
      %p209 = scmp.eq.s32.totalorder %s30, 3
      %p210 = por %p208, %p209
      %p211 = scmp.ne.s32.totalorder %s203, %s206
      %p212 = scmp.eq.s32.totalorder %s30, 0
      %p213 = por %p211, %p212
      %p214 = scmp.ne.s32.totalorder %s203, %s206
      %p215 = scmp.eq.s32.totalorder %s35, 3
      %p216 = por %p214, %p215
      %p217 = scmp.ne.s32.totalorder %s206, %s207
      %p218 = scmp.eq.s32.totalorder %s35, 0
      %p219 = por %p217, %p218
      %p220 = scmp.ne.s32.totalorder %s206, %s207
      %p221 = scmp.eq.s32.totalorder %s36, 3
      %p222 = por %p220, %p221
      %p224 = scmp.ne.s32.totalorder %s207, %s223
      %p225 = scmp.eq.s32.totalorder %s36, 0
      %p226 = por %p224, %p225
      %s227 = ssub.s32 %s38, %s45
      %p228 = scmp.eq.s32.totalorder %s227, 0
      %s230 = sadd.s32 %s229, 1
      %s231 = scalar_select %p228, %s229, %s230
      %p234 = pneg %p228
      %p235 = scmp.eq.s32.totalorder %s30, 3
      %p236 = por %p234, %p235
      %p237 = scmp.ne.s32.totalorder %s229, %s232
      %p238 = scmp.eq.s32.totalorder %s30, 0
      %p239 = por %p237, %p238
      %p240 = scmp.ne.s32.totalorder %s229, %s232
      %p241 = scmp.eq.s32.totalorder %s35, 3
      %p242 = por %p240, %p241
      %p243 = scmp.ne.s32.totalorder %s232, %s233
      %p244 = scmp.eq.s32.totalorder %s35, 0
      %p245 = por %p243, %p244
      %p246 = scmp.ne.s32.totalorder %s232, %s233
      %p247 = scmp.eq.s32.totalorder %s36, 3
      %p248 = por %p246, %p247
      %p250 = scmp.ne.s32.totalorder %s233, %s249
      %p251 = scmp.eq.s32.totalorder %s36, 0
      %p252 = por %p250, %p251
      %s253 = ssub.s32 %s38, %s45
      %p254 = scmp.eq.s32.totalorder %s253, 0
      %s256 = sadd.s32 %s255, 1
      %s257 = scalar_select %p254, %s255, %s256
      %p260 = pneg %p254
      %p261 = scmp.eq.s32.totalorder %s30, 3
      %p262 = por %p260, %p261
      %p263 = scmp.ne.s32.totalorder %s255, %s258
      %p264 = scmp.eq.s32.totalorder %s30, 0
      %p265 = por %p263, %p264
      %p266 = scmp.ne.s32.totalorder %s255, %s258
      %p267 = scmp.eq.s32.totalorder %s35, 3
      %p268 = por %p266, %p267
      %p269 = scmp.ne.s32.totalorder %s258, %s259
      %p270 = scmp.eq.s32.totalorder %s35, 0
      %p271 = por %p269, %p270
      %p272 = scmp.ne.s32.totalorder %s258, %s259
      %p273 = scmp.eq.s32.totalorder %s36, 3
      %p274 = por %p272, %p273
      %p276 = scmp.ne.s32.totalorder %s259, %s275
      %p277 = scmp.eq.s32.totalorder %s36, 0
      %p278 = por %p276, %p277
      %s279 = ssub.s32 %s38, %s45
      %p280 = scmp.eq.s32.totalorder %s279, 0
      %s282 = sadd.s32 %s281, 1
      %s283 = scalar_select %p280, %s281, %s282
      %p286 = pneg %p280
      %p287 = scmp.eq.s32.totalorder %s30, 3
      %p288 = por %p286, %p287
      %p289 = scmp.ne.s32.totalorder %s281, %s284
      %p290 = scmp.eq.s32.totalorder %s30, 0
      %p291 = por %p289, %p290
      %p292 = scmp.ne.s32.totalorder %s281, %s284
      %p293 = scmp.eq.s32.totalorder %s35, 3
      %p294 = por %p292, %p293
      %p295 = scmp.ne.s32.totalorder %s284, %s285
      %p296 = scmp.eq.s32.totalorder %s35, 0
      %p297 = por %p295, %p296
      %p298 = scmp.ne.s32.totalorder %s284, %s285
      %p299 = scmp.eq.s32.totalorder %s36, 3
      %p300 = por %p298, %p299
      %p302 = scmp.ne.s32.totalorder %s285, %s301
      %p303 = scmp.eq.s32.totalorder %s36, 0
      %p304 = por %p302, %p303
      %s305 = ssub.s32 %s38, %s45
      %p306 = scmp.eq.s32.totalorder %s305, 0
      %s308 = sadd.s32 %s307, 1
      %s309 = scalar_select %p306, %s307, %s308
      %p312 = pneg %p306
      %p313 = scmp.eq.s32.totalorder %s30, 3
      %p314 = por %p312, %p313
      %p315 = scmp.ne.s32.totalorder %s307, %s310
      %p316 = scmp.eq.s32.totalorder %s30, 0
      %p317 = por %p315, %p316
      %p318 = scmp.ne.s32.totalorder %s307, %s310
      %p319 = scmp.eq.s32.totalorder %s35, 3
      %p320 = por %p318, %p319
      %p321 = scmp.ne.s32.totalorder %s310, %s311
      %p322 = scmp.eq.s32.totalorder %s35, 0
      %p323 = por %p321, %p322
      %p324 = scmp.ne.s32.totalorder %s310, %s311
      %p325 = scmp.eq.s32.totalorder %s36, 3
      %p326 = por %p324, %p325
      %p328 = scmp.ne.s32.totalorder %s311, %s327
      %p329 = scmp.eq.s32.totalorder %s36, 0
      %p330 = por %p328, %p329
      %s331 = ssub.s32 %s38, %s45
      %p332 = scmp.eq.s32.totalorder %s331, 0
      %s334 = sadd.s32 %s333, 1
      %s335 = scalar_select %p332, %s333, %s334
      %p338 = pneg %p332
      %p339 = scmp.eq.s32.totalorder %s30, 3
      %p340 = por %p338, %p339
      %p341 = scmp.ne.s32.totalorder %s333, %s336
      %p342 = scmp.eq.s32.totalorder %s30, 0
      %p343 = por %p341, %p342
      %p344 = scmp.ne.s32.totalorder %s333, %s336
      %p345 = scmp.eq.s32.totalorder %s35, 3
      %p346 = por %p344, %p345
      %p347 = scmp.ne.s32.totalorder %s336, %s337
      %p348 = scmp.eq.s32.totalorder %s35, 0
      %p349 = por %p347, %p348
      %p350 = scmp.ne.s32.totalorder %s336, %s337
      %p351 = scmp.eq.s32.totalorder %s36, 3
      %p352 = por %p350, %p351
      %p354 = scmp.ne.s32.totalorder %s337, %s353
      %p355 = scmp.eq.s32.totalorder %s36, 0
      %p356 = por %p354, %p355
      %s357 = ssub.s32 %s38, %s45
      %p358 = scmp.eq.s32.totalorder %s357, 0
      %s360 = sadd.s32 %s359, 1
      %s361 = scalar_select %p358, %s359, %s360
      %p364 = pneg %p358
      %p365 = scmp.eq.s32.totalorder %s30, 3
      %p366 = por %p364, %p365
      %p367 = scmp.ne.s32.totalorder %s359, %s362
      %p368 = scmp.eq.s32.totalorder %s30, 0
      %p369 = por %p367, %p368
      %p370 = scmp.ne.s32.totalorder %s359, %s362
      %p371 = scmp.eq.s32.totalorder %s35, 3
      %p372 = por %p370, %p371
      %p373 = scmp.ne.s32.totalorder %s362, %s363
      %p374 = scmp.eq.s32.totalorder %s35, 0
      %p375 = por %p373, %p374
      %p376 = scmp.ne.s32.totalorder %s362, %s363
      %p377 = scmp.eq.s32.totalorder %s36, 3
      %p378 = por %p376, %p377
      %p380 = scmp.ne.s32.totalorder %s363, %s379
      %p381 = scmp.eq.s32.totalorder %s36, 0
      %p382 = por %p380, %p381
      %s383 = ssub.s32 %s38, %s45
      %p384 = scmp.eq.s32.totalorder %s383, 0
      %s386 = sadd.s32 %s385, 1
      %s387 = scalar_select %p384, %s385, %s386
      %p390 = pneg %p384
      %p391 = scmp.eq.s32.totalorder %s30, 3
      %p392 = por %p390, %p391
      %p393 = scmp.ne.s32.totalorder %s385, %s388
      %p394 = scmp.eq.s32.totalorder %s30, 0
      %p395 = por %p393, %p394
      %p396 = scmp.ne.s32.totalorder %s385, %s388
      %p397 = scmp.eq.s32.totalorder %s35, 3
      %p398 = por %p396, %p397
      %p399 = scmp.ne.s32.totalorder %s388, %s389
      %p400 = scmp.eq.s32.totalorder %s35, 0
      %p401 = por %p399, %p400
      %p402 = scmp.ne.s32.totalorder %s388, %s389
      %p403 = scmp.eq.s32.totalorder %s36, 3
      %p404 = por %p402, %p403
      %p406 = scmp.ne.s32.totalorder %s389, %s405
      %p407 = scmp.eq.s32.totalorder %s36, 0
      %p408 = por %p406, %p407
      %s410 = sadd.s32 %s409, 1
      %p413 = scmp.eq.s32.totalorder %s30, 3
      %p414 = scmp.ne.s32.totalorder %s409, %s411
      %p415 = scmp.eq.s32.totalorder %s30, 0
      %p416 = por %p414, %p415
      %p417 = scmp.ne.s32.totalorder %s409, %s411
      %p418 = scmp.eq.s32.totalorder %s35, 3
      %p419 = por %p417, %p418
      %p420 = scmp.ne.s32.totalorder %s411, %s412
      %p421 = scmp.eq.s32.totalorder %s35, 0
      %p422 = por %p420, %p421
      %p423 = scmp.ne.s32.totalorder %s411, %s412
      %p424 = scmp.eq.s32.totalorder %s36, 3
      %p425 = por %p423, %p424
      %p427 = scmp.ne.s32.totalorder %s412, %s426
      %p428 = scmp.eq.s32.totalorder %s36, 0
      %p429 = por %p427, %p428
      %s431 = sadd.s32 %s430, 1
      %p434 = scmp.eq.s32.totalorder %s30, 3
      %p435 = scmp.ne.s32.totalorder %s430, %s432
      %p436 = scmp.eq.s32.totalorder %s30, 0
      %p437 = por %p435, %p436
      %p438 = scmp.ne.s32.totalorder %s430, %s432
      %p439 = scmp.eq.s32.totalorder %s35, 3
      %p440 = por %p438, %p439
      %p441 = scmp.ne.s32.totalorder %s432, %s433
      %p442 = scmp.eq.s32.totalorder %s35, 0
      %p443 = por %p441, %p442
      %p444 = scmp.ne.s32.totalorder %s432, %s433
      %p445 = scmp.eq.s32.totalorder %s36, 3
      %p446 = por %p444, %p445
      %p448 = scmp.ne.s32.totalorder %s433, %s447
      %p449 = scmp.eq.s32.totalorder %s36, 0
      %p450 = por %p448, %p449
      %s451 = ssub.s32 %s37, %s49
      %p452 = scmp.eq.s32.totalorder %s451, 0
      %s454 = sadd.s32 %s453, 1
      %s455 = scalar_select %p452, %s453, %s454
      %p458 = pneg %p452
      %p459 = scmp.eq.s32.totalorder %s30, 3
      %p460 = por %p458, %p459
      %p461 = scmp.ne.s32.totalorder %s453, %s456
      %p462 = scmp.eq.s32.totalorder %s30, 0
      %p463 = por %p461, %p462
      %p464 = scmp.ne.s32.totalorder %s453, %s456
      %p465 = scmp.eq.s32.totalorder %s35, 3
      %p466 = por %p464, %p465
      %p467 = scmp.ne.s32.totalorder %s456, %s457
      %p468 = scmp.eq.s32.totalorder %s35, 0
      %p469 = por %p467, %p468
      %p470 = scmp.ne.s32.totalorder %s456, %s457
      %p471 = scmp.eq.s32.totalorder %s36, 3
      %p472 = por %p470, %p471
      %p474 = scmp.ne.s32.totalorder %s457, %s473
      %p475 = scmp.eq.s32.totalorder %s36, 0
      %p476 = por %p474, %p475
      %s477 = smul.u32 %s38, 2
      %s478 = sadd.s32 %s477, %s37
      %s479 = smul.u32 %s45, 2
      %s480 = sadd.s32 %s479, %s49
      %s481 = ssub.s32 %s478, %s480
      %p482 = scmp.eq.s32.totalorder %s481, 0
      %s484 = sadd.s32 %s483, 1
      %s485 = scalar_select %p482, %s483, %s484
      %p488 = pneg %p482
      %p489 = scmp.eq.s32.totalorder %s30, 3
      %p490 = por %p488, %p489
      %p491 = scmp.ne.s32.totalorder %s483, %s486
      %p492 = scmp.eq.s32.totalorder %s30, 0
      %p493 = por %p491, %p492
      %p494 = scmp.ne.s32.totalorder %s483, %s486
      %p495 = scmp.eq.s32.totalorder %s35, 3
      %p496 = por %p494, %p495
      %p497 = scmp.ne.s32.totalorder %s486, %s487
      %p498 = scmp.eq.s32.totalorder %s35, 0
      %p499 = por %p497, %p498
      %p500 = scmp.ne.s32.totalorder %s486, %s487
      %p501 = scmp.eq.s32.totalorder %s36, 3
      %p502 = por %p500, %p501
      %p504 = scmp.ne.s32.totalorder %s487, %s503
      %p505 = scmp.eq.s32.totalorder %s36, 0
      %p506 = por %p504, %p505
      %p507 = scmp.le.s32.totalorder 1, %s30
      %p508 = scmp.lt.s32.totalorder %s30, 5
      %p509 = pnand %p507, %p508
      %p510 = pneg %p509
      // Predicated region
      $region9: #{tpu_custom_call.1} parent=5 // pred_check
        _
      $region10: #{tpu_custom_call.1} parent=5 // pred_check_branch
        %512 = sbr.rel (%p509) target = $region12
      $region11: #{tpu_custom_call.1} parent=5 // pred_region
        %s513 = ssub.s32 %s30, 1
        // Predicated region
        $region13: #{tpu_custom_call.1} parent=11 // pred_check
          %p514 = pneg %p63
        $region14: #{tpu_custom_call.1} parent=11 // pred_check_branch
          %516 = sbr.rel (%p514) target = $region16
        $region15: #{tpu_custom_call.1} parent=11 // pred_region
          _
        $region16: #{tpu_custom_call.1} parent=11 // pred_fallthru
          _
        // Predicated region
        $region17: #{tpu_custom_call.1} parent=11 // pred_check
          %p517 = pneg %p422
        $region18: #{tpu_custom_call.1} parent=11 // pred_check_branch
          %519 = sbr.rel (%p517) target = $region20
        $region19: #{tpu_custom_call.1} parent=11 // pred_region
          _
        $region20: #{tpu_custom_call.1} parent=11 // pred_fallthru
          _
        // Predicated region
        $region21: #{tpu_custom_call.1} parent=11 // pred_check
          %p520 = pneg %p443
        $region22: #{tpu_custom_call.1} parent=11 // pred_check_branch
          %522 = sbr.rel (%p520) target = $region24
        $region23: #{tpu_custom_call.1} parent=11 // pred_region
          _
        $region24: #{tpu_custom_call.1} parent=11 // pred_fallthru
          _
      $region12: #{tpu_custom_call.1} parent=5 // pred_fallthru
        _
      %p523 = scmp.lt.s32.totalorder %s30, 4
      // Predicated region
      $region25: #{tpu_custom_call.1} parent=5 // pred_check
        %p524 = pneg %p523
      $region26: #{tpu_custom_call.1} parent=5 // pred_check_branch
        %526 = sbr.rel (%p524) target = $region28
      $region27: #{tpu_custom_call.1} parent=5 // pred_region
        // Predicated region
        $region29: #{tpu_custom_call.1} parent=27 // pred_check
          %p527 = pneg %p83
        $region30: #{tpu_custom_call.1} parent=27 // pred_check_branch
          %529 = sbr.rel (%p527) target = $region32
        $region31: #{tpu_custom_call.1} parent=27 // pred_region
          %p530 = scmp.lt.s32.totalorder %s37, 1
          %s531 = scalar_select %p530, %s37, 1
          %s532 = smul.addr %s531, 4
          %s533 = scalar_lea.vmem %s1, %s532
        $region32: #{tpu_custom_call.1} parent=27 // pred_fallthru
          _
        // Predicated region
        $region33: #{tpu_custom_call.1} parent=27 // pred_check
          %p534 = pneg %p109
        $region34: #{tpu_custom_call.1} parent=27 // pred_check_branch
          %536 = sbr.rel (%p534) target = $region36
        $region35: #{tpu_custom_call.1} parent=27 // pred_region
          %p537 = scmp.lt.s32.totalorder %s38, 1
          %s538 = scalar_select %p537, %s38, 1
          %s539 = scalar_lea.vmem %s2, %s538
        $region36: #{tpu_custom_call.1} parent=27 // pred_fallthru
          _
        // Predicated region
        $region37: #{tpu_custom_call.1} parent=27 // pred_check
          %p540 = pneg %p135
        $region38: #{tpu_custom_call.1} parent=27 // pred_check_branch
          %542 = sbr.rel (%p540) target = $region40
        $region39: #{tpu_custom_call.1} parent=27 // pred_region
          %p543 = scmp.lt.s32.totalorder %s38, 1
          %s544 = scalar_select %p543, %s38, 1
          %s545 = scalar_lea.vmem %s3, %s544
        $region40: #{tpu_custom_call.1} parent=27 // pred_fallthru
          _
        // Predicated region
        $region41: #{tpu_custom_call.1} parent=27 // pred_check
          %p546 = pneg %p161
        $region42: #{tpu_custom_call.1} parent=27 // pred_check_branch
          %548 = sbr.rel (%p546) target = $region44
        $region43: #{tpu_custom_call.1} parent=27 // pred_region
          %p549 = scmp.lt.s32.totalorder %s38, 1
          %s550 = scalar_select %p549, %s38, 1
          %s551 = smul.addr %s550, 4
          %s552 = smul.addr %s551, 4
          %s553 = scalar_lea.vmem %s4, %s552
        $region44: #{tpu_custom_call.1} parent=27 // pred_fallthru
          _
        // Predicated region
        $region45: #{tpu_custom_call.1} parent=27 // pred_check
          %p554 = pneg %p187
        $region46: #{tpu_custom_call.1} parent=27 // pred_check_branch
          %556 = sbr.rel (%p554) target = $region48
        $region47: #{tpu_custom_call.1} parent=27 // pred_region
          %p557 = scmp.lt.s32.totalorder %s38, 1
          %s558 = scalar_select %p557, %s38, 1
          %s559 = scalar_lea.vmem %s5, %s558
        $region48: #{tpu_custom_call.1} parent=27 // pred_fallthru
          _
        // Predicated region
        $region49: #{tpu_custom_call.1} parent=27 // pred_check
          %p560 = pneg %p213
        $region50: #{tpu_custom_call.1} parent=27 // pred_check_branch
          %562 = sbr.rel (%p560) target = $region52
        $region51: #{tpu_custom_call.1} parent=27 // pred_region
          %p563 = scmp.lt.s32.totalorder %s38, 1
          %s564 = scalar_select %p563, %s38, 1
          %s565 = smul.addr %s564, 4
          %s566 = smul.addr %s565, 4
          %s567 = scalar_lea.vmem %s6, %s566
        $region52: #{tpu_custom_call.1} parent=27 // pred_fallthru
          _
        // Predicated region
        $region53: #{tpu_custom_call.1} parent=27 // pred_check
          %p568 = pneg %p239
        $region54: #{tpu_custom_call.1} parent=27 // pred_check_branch
          %570 = sbr.rel (%p568) target = $region56
        $region55: #{tpu_custom_call.1} parent=27 // pred_region
          %p571 = scmp.lt.s32.totalorder %s38, 1
          %s572 = scalar_select %p571, %s38, 1
          %s573 = scalar_lea.vmem %s7, %s572
        $region56: #{tpu_custom_call.1} parent=27 // pred_fallthru
          _
        // Predicated region
        $region57: #{tpu_custom_call.1} parent=27 // pred_check
          %p574 = pneg %p265
        $region58: #{tpu_custom_call.1} parent=27 // pred_check_branch
          %576 = sbr.rel (%p574) target = $region60
        $region59: #{tpu_custom_call.1} parent=27 // pred_region
          %p577 = scmp.lt.s32.totalorder %s38, 1
          %s578 = scalar_select %p577, %s38, 1
          %s579 = scalar_lea.vmem %s8, %s578
        $region60: #{tpu_custom_call.1} parent=27 // pred_fallthru
          _
        // Predicated region
        $region61: #{tpu_custom_call.1} parent=27 // pred_check
          %p580 = pneg %p291
        $region62: #{tpu_custom_call.1} parent=27 // pred_check_branch
          %582 = sbr.rel (%p580) target = $region64
        $region63: #{tpu_custom_call.1} parent=27 // pred_region
          %p583 = scmp.lt.s32.totalorder %s38, 1
          %s584 = scalar_select %p583, %s38, 1
          %s585 = scalar_lea.vmem %s9, %s584
        $region64: #{tpu_custom_call.1} parent=27 // pred_fallthru
          _
        // Predicated region
        $region65: #{tpu_custom_call.1} parent=27 // pred_check
          %p586 = pneg %p317
        $region66: #{tpu_custom_call.1} parent=27 // pred_check_branch
          %588 = sbr.rel (%p586) target = $region68
        $region67: #{tpu_custom_call.1} parent=27 // pred_region
          %p589 = scmp.lt.s32.totalorder %s38, 1
          %s590 = scalar_select %p589, %s38, 1
          %s591 = smul.addr %s590, 4
          %s592 = smul.addr %s591, 4
          %s593 = scalar_lea.vmem %s10, %s592
        $region68: #{tpu_custom_call.1} parent=27 // pred_fallthru
          _
        // Predicated region
        $region69: #{tpu_custom_call.1} parent=27 // pred_check
          %p594 = pneg %p343
        $region70: #{tpu_custom_call.1} parent=27 // pred_check_branch
          %596 = sbr.rel (%p594) target = $region72
        $region71: #{tpu_custom_call.1} parent=27 // pred_region
          %p597 = scmp.lt.s32.totalorder %s38, 1
          %s598 = scalar_select %p597, %s38, 1
          %s599 = scalar_lea.vmem %s11, %s598
        $region72: #{tpu_custom_call.1} parent=27 // pred_fallthru
          _
        // Predicated region
        $region73: #{tpu_custom_call.1} parent=27 // pred_check
          %p600 = pneg %p369
        $region74: #{tpu_custom_call.1} parent=27 // pred_check_branch
          %602 = sbr.rel (%p600) target = $region76
        $region75: #{tpu_custom_call.1} parent=27 // pred_region
          %p603 = scmp.lt.s32.totalorder %s38, 1
          %s604 = scalar_select %p603, %s38, 1
          %s605 = smul.addr %s604, 16
          %s606 = smul.addr %s605, 4
          %s607 = scalar_lea.vmem %s12, %s606
        $region76: #{tpu_custom_call.1} parent=27 // pred_fallthru
          _
        // Predicated region
        $region77: #{tpu_custom_call.1} parent=27 // pred_check
          %p608 = pneg %p395
        $region78: #{tpu_custom_call.1} parent=27 // pred_check_branch
          %610 = sbr.rel (%p608) target = $region80
        $region79: #{tpu_custom_call.1} parent=27 // pred_region
          %p611 = scmp.lt.s32.totalorder %s38, 1
          %s612 = scalar_select %p611, %s38, 1
          %s613 = scalar_lea.vmem %s13, %s612
        $region80: #{tpu_custom_call.1} parent=27 // pred_fallthru
          _
      $region28: #{tpu_custom_call.1} parent=5 // pred_fallthru
        _
      %p614 = scmp.le.s32.totalorder 1, %s30
      %p615 = scmp.lt.s32.totalorder %s30, 5
      %p616 = pnand %p614, %p615
      %p617 = pneg %p616
      // Predicated region
      $region81: #{tpu_custom_call.1} parent=5 // pred_check
        _
      $region82: #{tpu_custom_call.1} parent=5 // pred_check_branch
        %619 = sbr.rel (%p616) target = $region84
      $region83: #{tpu_custom_call.1} parent=5 // pred_region
        %s620 = ssub.s32 %s30, 1
        %p621 = pneg %p63
        %p622 = pneg %p60
        %p623 = scmp.lt.s32.totalorder %s39, 1
        %s624 = scalar_select %p623, %s39, 1
        %s625 = smul.addr %s624, 4
        %s626 = scalar_lea.vmem %s1, %s625
        %p627 = pneg %p89
        %p628 = pneg %p86
        %p629 = scmp.lt.s32.totalorder %s40, 1
        %s630 = scalar_select %p629, %s40, 1
        %s631 = scalar_lea.vmem %s2, %s630
        %p632 = pneg %p115
        %p633 = pneg %p112
        %p634 = scmp.lt.s32.totalorder %s40, 1
        %s635 = scalar_select %p634, %s40, 1
        %s636 = scalar_lea.vmem %s3, %s635
        %p637 = pneg %p141
        %p638 = pneg %p138
        %p639 = scmp.lt.s32.totalorder %s40, 1
        %s640 = scalar_select %p639, %s40, 1
        %s641 = smul.addr %s640, 4
        %s642 = smul.addr %s641, 4
        %s643 = scalar_lea.vmem %s4, %s642
        %p644 = pneg %p167
        %p645 = pneg %p164
        %p646 = scmp.lt.s32.totalorder %s40, 1
        %s647 = scalar_select %p646, %s40, 1
        %s648 = scalar_lea.vmem %s5, %s647
        %p649 = pneg %p193
        %p650 = pneg %p190
        %p651 = scmp.lt.s32.totalorder %s40, 1
        %s652 = scalar_select %p651, %s40, 1
        %s653 = smul.addr %s652, 4
        %s654 = smul.addr %s653, 4
        %s655 = scalar_lea.vmem %s6, %s654
        %p656 = pneg %p219
        %p657 = pneg %p216
        %p658 = scmp.lt.s32.totalorder %s40, 1
        %s659 = scalar_select %p658, %s40, 1
        %s660 = scalar_lea.vmem %s7, %s659
        %p661 = pneg %p245
        %p662 = pneg %p242
        %p663 = scmp.lt.s32.totalorder %s40, 1
        %s664 = scalar_select %p663, %s40, 1
        %s665 = scalar_lea.vmem %s8, %s664
        %p666 = pneg %p271
        %p667 = pneg %p268
        %p668 = scmp.lt.s32.totalorder %s40, 1
        %s669 = scalar_select %p668, %s40, 1
        %s670 = scalar_lea.vmem %s9, %s669
        %p671 = pneg %p297
        %p672 = pneg %p294
        %p673 = scmp.lt.s32.totalorder %s40, 1
        %s674 = scalar_select %p673, %s40, 1
        %s675 = smul.addr %s674, 4
        %s676 = smul.addr %s675, 4
        %s677 = scalar_lea.vmem %s10, %s676
        %p678 = pneg %p323
        %p679 = pneg %p320
        %p680 = scmp.lt.s32.totalorder %s40, 1
        %s681 = scalar_select %p680, %s40, 1
        %s682 = scalar_lea.vmem %s11, %s681
        %p683 = pneg %p349
        %p684 = pneg %p346
        %p685 = scmp.lt.s32.totalorder %s40, 1
        %s686 = scalar_select %p685, %s40, 1
        %s687 = smul.addr %s686, 16
        %s688 = smul.addr %s687, 4
        %s689 = scalar_lea.vmem %s12, %s688
        %p690 = pneg %p375
        %p691 = pneg %p372
        %p692 = scmp.lt.s32.totalorder %s40, 1
        %s693 = scalar_select %p692, %s40, 1
        %s694 = scalar_lea.vmem %s13, %s693
        %p695 = pneg %p401
        %p696 = pneg %p398
        %p697 = pneg %p422
        %p698 = pneg %p419
        %p699 = pneg %p443
        %p700 = pneg %p440
        %p701 = pneg %p469
        %p702 = pneg %p466
        %s703 = sand.u32 %s456, 1
        %s704 = scalar_lea.sflag [#allocation6], %s703
        %s705 = sand.u32 %s456, 1
        %s706 = smul.addr %s705, 8
        %s707 = scalar_lea.vmem [#allocation5], %s706
        %p708 = pneg %p499
        %p709 = pneg %p496
        %s710 = sand.u32 %s486, 1
        %s711 = scalar_lea.sflag [#allocation8], %s710
        %s712 = sand.u32 %s486, 1
        %s713 = smul.addr %s712, 16
        %s714 = scalar_lea.vmem [#allocation7], %s713
        %p715 = scmp.lt.s32.totalorder %s39, 1
        %s716 = scalar_select %p715, %s39, 1
        %s717 = smul.addr %s716, 4
        %s718 = scalar_lea.vmem %s1, %s717
        %p719 = scmp.lt.s32.totalorder %s40, 1
        %s720 = scalar_select %p719, %s40, 1
        %s721 = scalar_lea.vmem %s2, %s720
        %p722 = scmp.lt.s32.totalorder %s40, 1
        %s723 = scalar_select %p722, %s40, 1
        %s724 = scalar_lea.vmem %s3, %s723
        %p725 = scmp.lt.s32.totalorder %s40, 1
        %s726 = scalar_select %p725, %s40, 1
        %s727 = smul.addr %s726, 4
        %s728 = smul.addr %s727, 4
        %s729 = scalar_lea.vmem %s4, %s728
        %p730 = scmp.lt.s32.totalorder %s40, 1
        %s731 = scalar_select %p730, %s40, 1
        %s732 = scalar_lea.vmem %s5, %s731
        %p733 = scmp.lt.s32.totalorder %s40, 1
        %s734 = scalar_select %p733, %s40, 1
        %s735 = smul.addr %s734, 4
        %s736 = smul.addr %s735, 4
        %s737 = scalar_lea.vmem %s6, %s736
        %p738 = scmp.lt.s32.totalorder %s40, 1
        %s739 = scalar_select %p738, %s40, 1
        %s740 = scalar_lea.vmem %s7, %s739
        %p741 = scmp.lt.s32.totalorder %s40, 1
        %s742 = scalar_select %p741, %s40, 1
        %s743 = scalar_lea.vmem %s8, %s742
        %p744 = scmp.lt.s32.totalorder %s40, 1
        %s745 = scalar_select %p744, %s40, 1
        %s746 = scalar_lea.vmem %s9, %s745
        %p747 = scmp.lt.s32.totalorder %s40, 1
        %s748 = scalar_select %p747, %s40, 1
        %s749 = smul.addr %s748, 4
        %s750 = smul.addr %s749, 4
        %s751 = scalar_lea.vmem %s10, %s750
        %p752 = scmp.lt.s32.totalorder %s40, 1
        %s753 = scalar_select %p752, %s40, 1
        %s754 = scalar_lea.vmem %s11, %s753
        %p755 = scmp.lt.s32.totalorder %s40, 1
        %s756 = scalar_select %p755, %s40, 1
        %s757 = smul.addr %s756, 16
        %s758 = smul.addr %s757, 4
        %s759 = scalar_lea.vmem %s12, %s758
        %p760 = scmp.lt.s32.totalorder %s40, 1
        %s761 = scalar_select %p760, %s40, 1
        %s762 = scalar_lea.vmem %s13, %s761
        %s763 = smul.u32 %s40, 2
        %s764 = sadd.s32 %s763, %s39
        %p766 = scmp.eq.s32.totalorder %s40, 0
        // Predicated region
        $region85: #{tpu_custom_call.1} parent=83 // pred_check
          %p767 = pneg %p766
        $region86: #{tpu_custom_call.1} parent=83 // pred_check_branch
          %769 = sbr.rel (%p767) target = $region88
        $region87: #{tpu_custom_call.1} parent=83 // pred_region
          %v770 = vld [vmem:[%s718] sm:$0xf]
          %v771 = vunpack.c.l.bf16 %v770
          %vm772 = vcmask 261120
          %773 = vst.msk [vmem:[#allocation2] sm:$0xff] %vm772, %v771
        $region88: #{tpu_custom_call.1} parent=83 // pred_fallthru
          _
        %v774 = vld [vmem:[#allocation2] sm:$0xff]
        %v775 = vld [vmem:[%s721] sm:$0x1]
        %v776 = vld [vmem:[%s724] sm:$0x1]
        %vm777 = vcmask 261120
        %v778 = vsel %vm777, %v774, 0.0
        %779 = vadd.xlane.f32.xlu0 %v778
        %v780 = vpop.xlane.xlu0 %779
        %v781 = vrcp.pop 32.0
        %v782 = vmul.f32 %v780, %v781
        %v783 = vsub.f32 %v774, %v782
        %v784 = vmul.f32 %v783, %v783
        %v785 = vsel %vm777, %v784, 0.0
        %786 = vadd.xlane.f32.xlu0 %v785
        %v787 = vpop.xlane.xlu0 %786
        %v788 = vmul.f32 %v787, %v781
        %v789 = vadd.f32 %v788, 1e-05
        %v790 = vrsqrt.pop %v789
        %v791 = vmul.f32 %v783, %v790
        %v793 = vlaneseq
        %v794 = vshrl.u32 %v793, 7
        %v795 = vsub.s32 0, %v794
        %v796 = vrot.slane %v775, %v795
        %v798 = vmul.f32 %v791, %v796
        %v800 = vlaneseq
        %v801 = vshrl.u32 %v800, 7
        %v802 = vsub.s32 0, %v801
        %v803 = vrot.slane %v776, %v802
        %v805 = vadd.f32 %v798, %v803
        %v806 = vpack.c.bf16 %v805, %v805
        %v807 = vld [vmem:[%s729] sm:$0xf]
        %v808 = vld [vmem:[%s729 + $0x4] sm:$0xf]
        %v809 = vld [vmem:[%s729 + $0x8] sm:$0xf]
        %v810 = vld [vmem:[%s729 + $0xc] sm:$0xf]
        %v811 = vld [vmem:[%s732] sm:$0x1]
        %v813 = vlaneseq
        %v814 = vshrl.u32 %v813, 7
        %v815 = vsub.s32 0, %v814
        %v816 = vrot.slane %v811, %v815
        %v822 = vunpack.c.l.b16 %v807
        %v823 = vunpack.c.l.b16 %v808
        %v824 = vunpack.c.l.b16 %v809
        %v825 = vunpack.c.l.b16 %v810
        %v826 = vpack.c.b16 %v823, %v822
        %v827 = vpack.c.b16 %v825, %v824
        %v831 = vsel %vm777, %v806, 0
        %833 = vmatprep.subr.bf16.mxu0 0
        %834 = vmatpush1.bf16.msra.mxu0 0
        %835 = vmatprep.subr.bf16.mxu0 0
        %836 = vmatpush1.bf16.msra.mxu0 0
        %837 = vmatprep.subr.bf16.mxu0 0
        %838 = vmatpush1.bf16.msra.mxu0 0
        %839 = vmatprep.subr.bf16.mxu0 0
        %840 = vmatpush1.bf16.msra.mxu0 0
        %841 = vmatprep.subr.bf16.mxu0 0
        %842 = vmatpush1.bf16.msra.mxu0 0
        %843 = vmatprep.subr.bf16.mxu0 0
        %844 = vmatpush1.bf16.msra.mxu0 0
        %845 = vmatprep.subr.bf16.mxu0 0
        %846 = vmatpush1.bf16.msra.mxu0 %v827
        %847 = vmatprep.subr.bf16.mxu0 0
        %848 = vmatpush1.bf16.msra.mxu0 %v826
        %849 = vmatprep.subr.bf16.mxu0 0
        %850 = vmatpush2.bf16.msra.mxu0 0
        %851 = vmatprep.subr.bf16.mxu0 0
        %852 = vmatpush2.bf16.msra.mxu0 0
        %853 = vmatprep.subr.bf16.mxu0 0
        %854 = vmatpush2.bf16.msra.mxu0 0
        %855 = vmatprep.subr.bf16.mxu0 0
        %856 = vmatpush2.bf16.msra.mxu0 0
        %857 = vmatprep.subr.bf16.mxu0 0
        %858 = vmatpush2.bf16.msra.mxu0 0
        %859 = vmatprep.subr.bf16.mxu0 0
        %860 = vmatpush2.bf16.msra.mxu0 0
        %861 = vmatprep.subr.bf16.mxu0 0
        %862 = vmatpush2.bf16.msra.mxu0 0
        %863 = vmatprep.subr.bf16.mxu0 0
        %864 = vmatpush2.bf16.msra.mxu0 0
        %865 = vmatprep.mubr.bf16.mxu0 0
        %866 = vmatmul.mubr.bf16.gmra.mxu0 %v831
        %v867 = vpop.f32.mrf.mxu0
        %v868 = vadd.f32 %v816, %v867
        %v869 = vpop.f32.mrf.mxu0
        %v870 = vpop.f32.mrf.mxu0
        %v871 = vpop.f32.mrf.mxu0
        %872 = vdwg.mxu0
        %v873 = vpack.c.bf16 %v868, %v868
        %vm874 = vcmask 781312
        %875 = vst.msk [vmem:[#allocation3] sm:$0xf] %vm874, %v873
        %v876 = vld [vmem:[%s0] sm:$0xff]
        %v877 = vld [vmem:[#allocation3] sm:$0xf]
        %v879 = vunpack.c.l.b16 %v877
        %v880 = vpack.c.b16 %v879, %v879
        %881 = vrot.lane.b32.xlu0 %v880, 96
        %v882 = vpop.permute.xlu0 %881
        %vm883 = vcmask 64512
        %v885 = vsel %vm883, %v877, 0
        %v888 = vsel %vm883, %v882, 0
        %890 = vmatprep.subr.bf16.mxu0 0
        %891 = vmatpush1.bf16.xpose.msra.mxu0 0
        %892 = vmatprep.subr.bf16.mxu0 0
        %893 = vmatpush1.bf16.xpose.msra.mxu0 0
        %894 = vmatprep.subr.bf16.mxu0 0
        %895 = vmatpush1.bf16.xpose.msra.mxu0 0
        %896 = vmatprep.subr.bf16.mxu0 0
        %897 = vmatpush1.bf16.xpose.msra.mxu0 0
        %898 = vmatprep.subr.bf16.mxu0 0
        %899 = vmatpush1.bf16.xpose.msra.mxu0 0
        %900 = vmatprep.subr.bf16.mxu0 0
        %901 = vmatpush1.bf16.xpose.msra.mxu0 0
        %902 = vmatprep.subr.bf16.mxu0 0
        %903 = vmatpush1.bf16.xpose.msra.mxu0 0
        %904 = vmatprep.subr.bf16.mxu0 0
        %905 = vmatpush1.bf16.xpose.msra.mxu0 %v888
        %906 = vmatprep.subr.bf16.mxu0 0
        %907 = vmatpush2.bf16.xpose.msra.mxu0 0
        %908 = vmatprep.subr.bf16.mxu0 0
        %909 = vmatpush2.bf16.xpose.msra.mxu0 0
        %910 = vmatprep.subr.bf16.mxu0 0
        %911 = vmatpush2.bf16.xpose.msra.mxu0 0
        %912 = vmatprep.subr.bf16.mxu0 0
        %913 = vmatpush2.bf16.xpose.msra.mxu0 0
        %914 = vmatprep.subr.bf16.mxu0 0
        %915 = vmatpush2.bf16.xpose.msra.mxu0 0
        %916 = vmatprep.subr.bf16.mxu0 0
        %917 = vmatpush2.bf16.xpose.msra.mxu0 0
        %918 = vmatprep.subr.bf16.mxu0 0
        %919 = vmatpush2.bf16.xpose.msra.mxu0 0
        %920 = vmatprep.subr.bf16.mxu0 0
        %921 = vmatpush2.bf16.xpose.msra.mxu0 0
        %922 = vmatprep.mubr.bf16.mxu0 0
        %923 = vmatmul.mubr.bf16.gmra.mxu0 %v885
        %v924 = vpop.f32.mrf.mxu0
        %v925 = vadd.f32 0.0, %v924
        %v926 = vpop.f32.mrf.mxu0
        %v927 = vpop.f32.mrf.mxu0
        %v928 = vpop.f32.mrf.mxu0
        %929 = vdwg.mxu0
        %v930 = vmul.f32 %v925, 0.35355338
        %v931 = vadd.f32 %v930, %v876
        %v932 = vsel %vm883, %v931, -inf
        %933 = vmax.xlane.f32.xlu0 %v932
        %v934 = vpop.xlane.xlu0 %933
        %v935 = vsub.f32 %v931, %v934
        %v936 = vmul.f32 %v935, 1.442695
        %v937 = vpow.pop %v936
        %v938 = vsel %vm883, %v937, 0.0
        %939 = vadd.xlane.f32.xlu0 %v938
        %v940 = vpop.xlane.xlu0 %939
        %v941 = vrcp.pop %v940
        %v942 = vmul.f32 %v937, %v941
        %v943 = vpack.c.bf16 %v942, %v942
        %vm944 = vcmask 60416
        %945 = vst.msk [vmem:[%s714] sm:$0xf] %vm944, %v943
        %946 = vrot.lane.b32.xlu0 %v880, 64
        %v947 = vpop.permute.xlu0 %946
        %v949 = vsel %vm883, %v943, 0
        %vm951 = vcmask 1043456
        %v953 = vsel %vm951, %v947, 0
        %955 = vmatprep.subr.bf16.mxu0 0
        %956 = vmatpush1.bf16.msra.mxu0 0
        %957 = vmatprep.subr.bf16.mxu0 0
        %958 = vmatpush1.bf16.msra.mxu0 0
        %959 = vmatprep.subr.bf16.mxu0 0
        %960 = vmatpush1.bf16.msra.mxu0 0
        %961 = vmatprep.subr.bf16.mxu0 0
        %962 = vmatpush1.bf16.msra.mxu0 0
        %963 = vmatprep.subr.bf16.mxu0 0
        %964 = vmatpush1.bf16.msra.mxu0 0
        %965 = vmatprep.subr.bf16.mxu0 0
        %966 = vmatpush1.bf16.msra.mxu0 0
        %967 = vmatprep.subr.bf16.mxu0 0
        %968 = vmatpush1.bf16.msra.mxu0 0
        %969 = vmatprep.subr.bf16.mxu0 0
        %970 = vmatpush1.bf16.msra.mxu0 %v953
        %971 = vmatprep.subr.bf16.mxu0 0
        %972 = vmatpush2.bf16.msra.mxu0 0
        %973 = vmatprep.subr.bf16.mxu0 0
        %974 = vmatpush2.bf16.msra.mxu0 0
        %975 = vmatprep.subr.bf16.mxu0 0
        %976 = vmatpush2.bf16.msra.mxu0 0
        %977 = vmatprep.subr.bf16.mxu0 0
        %978 = vmatpush2.bf16.msra.mxu0 0
        %979 = vmatprep.subr.bf16.mxu0 0
        %980 = vmatpush2.bf16.msra.mxu0 0
        %981 = vmatprep.subr.bf16.mxu0 0
        %982 = vmatpush2.bf16.msra.mxu0 0
        %983 = vmatprep.subr.bf16.mxu0 0
        %984 = vmatpush2.bf16.msra.mxu0 0
        %985 = vmatprep.subr.bf16.mxu0 0
        %986 = vmatpush2.bf16.msra.mxu0 0
        %987 = vmatprep.mubr.bf16.mxu0 0
        %988 = vmatmul.mubr.bf16.gmra.mxu0 %v949
        %v989 = vpop.f32.mrf.mxu0
        %v990 = vadd.f32 0.0, %v989
        %v991 = vpop.f32.mrf.mxu0
        %v992 = vpop.f32.mrf.mxu0
        %v993 = vpop.f32.mrf.mxu0
        %994 = vdwg.mxu0
        %v995 = vpack.c.bf16 %v990, %v990
        %996 = vst.msk [vmem:[#allocation4] sm:$0xf] %vm944, %v995
        %v997 = vld [vmem:[#allocation3] sm:$0xf]
        %v999 = vunpack.c.l.b16 %v997
        %v1000 = vpack.c.b16 %v999, %v999
        %1001 = vrot.lane.b32.xlu0 %v1000, 120
        %v1002 = vpop.permute.xlu0 %1001
        %1003 = vrot.lane.b32.xlu0 %v1000, 88
        %v1004 = vpop.permute.xlu0 %1003
        %v1006 = vsel %vm883, %v1002, 0
        %v1009 = vsel %vm883, %v1004, 0
        %1011 = vmatprep.subr.bf16.mxu0 0
        %1012 = vmatpush1.bf16.xpose.msra.mxu0 0
        %1013 = vmatprep.subr.bf16.mxu0 0
        %1014 = vmatpush1.bf16.xpose.msra.mxu0 0
        %1015 = vmatprep.subr.bf16.mxu0 0
        %1016 = vmatpush1.bf16.xpose.msra.mxu0 0
        %1017 = vmatprep.subr.bf16.mxu0 0
        %1018 = vmatpush1.bf16.xpose.msra.mxu0 0
        %1019 = vmatprep.subr.bf16.mxu0 0
        %1020 = vmatpush1.bf16.xpose.msra.mxu0 0
        %1021 = vmatprep.subr.bf16.mxu0 0
        %1022 = vmatpush1.bf16.xpose.msra.mxu0 0
        %1023 = vmatprep.subr.bf16.mxu0 0
        %1024 = vmatpush1.bf16.xpose.msra.mxu0 0
        %1025 = vmatprep.subr.bf16.mxu0 0
        %1026 = vmatpush1.bf16.xpose.msra.mxu0 %v1009
        %1027 = vmatprep.subr.bf16.mxu0 0
        %1028 = vmatpush2.bf16.xpose.msra.mxu0 0
        %1029 = vmatprep.subr.bf16.mxu0 0
        %1030 = vmatpush2.bf16.xpose.msra.mxu0 0
        %1031 = vmatprep.subr.bf16.mxu0 0
        %1032 = vmatpush2.bf16.xpose.msra.mxu0 0
        %1033 = vmatprep.subr.bf16.mxu0 0
        %1034 = vmatpush2.bf16.xpose.msra.mxu0 0
        %1035 = vmatprep.subr.bf16.mxu0 0
        %1036 = vmatpush2.bf16.xpose.msra.mxu0 0
        %1037 = vmatprep.subr.bf16.mxu0 0
        %1038 = vmatpush2.bf16.xpose.msra.mxu0 0
        %1039 = vmatprep.subr.bf16.mxu0 0
        %1040 = vmatpush2.bf16.xpose.msra.mxu0 0
        %1041 = vmatprep.subr.bf16.mxu0 0
        %1042 = vmatpush2.bf16.xpose.msra.mxu0 0
        %1043 = vmatprep.mubr.bf16.mxu0 0
        %1044 = vmatmul.mubr.bf16.gmra.mxu0 %v1006
        %v1045 = vpop.f32.mrf.mxu0
        %v1046 = vadd.f32 0.0, %v1045
        %v1047 = vpop.f32.mrf.mxu0
        %v1048 = vpop.f32.mrf.mxu0
        %v1049 = vpop.f32.mrf.mxu0
        %1050 = vdwg.mxu0
        %v1051 = vmul.f32 %v1046, 0.35355338
        %v1052 = vadd.f32 %v1051, %v876
        %v1053 = vsel %vm883, %v1052, -inf
        %1054 = vmax.xlane.f32.xlu0 %v1053
        %v1055 = vpop.xlane.xlu0 %1054
        %v1056 = vsub.f32 %v1052, %v1055
        %v1057 = vmul.f32 %v1056, 1.442695
        %v1058 = vpow.pop %v1057
        %v1059 = vsel %vm883, %v1058, 0.0
        %1060 = vadd.xlane.f32.xlu0 %v1059
        %v1061 = vpop.xlane.xlu0 %1060
        %v1062 = vrcp.pop %v1061
        %v1063 = vmul.f32 %v1058, %v1062
        %v1064 = vpack.c.bf16 %v1063, %v1063
        %s1065 = scalar_lea.vmem %s714, 4 [#allocation7]
        %1066 = vst.msk [vmem:[%s1065] sm:$0xf] %vm944, %v1064
        %1067 = vrot.lane.b32.xlu0 %v1000, 56
        %v1068 = vpop.permute.xlu0 %1067
        %v1070 = vsel %vm883, %v1064, 0
        %v1073 = vsel %vm951, %v1068, 0
        %1075 = vmatprep.subr.bf16.mxu0 0
        %1076 = vmatpush1.bf16.msra.mxu0 0
        %1077 = vmatprep.subr.bf16.mxu0 0
        %1078 = vmatpush1.bf16.msra.mxu0 0
        %1079 = vmatprep.subr.bf16.mxu0 0
        %1080 = vmatpush1.bf16.msra.mxu0 0
        %1081 = vmatprep.subr.bf16.mxu0 0
        %1082 = vmatpush1.bf16.msra.mxu0 0
        %1083 = vmatprep.subr.bf16.mxu0 0
        %1084 = vmatpush1.bf16.msra.mxu0 0
        %1085 = vmatprep.subr.bf16.mxu0 0
        %1086 = vmatpush1.bf16.msra.mxu0 0
        %1087 = vmatprep.subr.bf16.mxu0 0
        %1088 = vmatpush1.bf16.msra.mxu0 0
        %1089 = vmatprep.subr.bf16.mxu0 0
        %1090 = vmatpush1.bf16.msra.mxu0 %v1073
        %1091 = vmatprep.subr.bf16.mxu0 0
        %1092 = vmatpush2.bf16.msra.mxu0 0
        %1093 = vmatprep.subr.bf16.mxu0 0
        %1094 = vmatpush2.bf16.msra.mxu0 0
        %1095 = vmatprep.subr.bf16.mxu0 0
        %1096 = vmatpush2.bf16.msra.mxu0 0
        %1097 = vmatprep.subr.bf16.mxu0 0
        %1098 = vmatpush2.bf16.msra.mxu0 0
        %1099 = vmatprep.subr.bf16.mxu0 0
        %1100 = vmatpush2.bf16.msra.mxu0 0
        %1101 = vmatprep.subr.bf16.mxu0 0
        %1102 = vmatpush2.bf16.msra.mxu0 0
        %1103 = vmatprep.subr.bf16.mxu0 0
        %1104 = vmatpush2.bf16.msra.mxu0 0
        %1105 = vmatprep.subr.bf16.mxu0 0
        %1106 = vmatpush2.bf16.msra.mxu0 0
        %1107 = vmatprep.mubr.bf16.mxu0 0
        %1108 = vmatmul.mubr.bf16.gmra.mxu0 %v1070
        %v1109 = vpop.f32.mrf.mxu0
        %v1110 = vadd.f32 0.0, %v1109
        %v1111 = vpop.f32.mrf.mxu0
        %v1112 = vpop.f32.mrf.mxu0
        %v1113 = vpop.f32.mrf.mxu0
        %1114 = vdwg.mxu0
        %v1115 = vpack.c.bf16 %v1110, %v1110
        %v1117 = vunpack.c.l.b16 %v1115
        %v1118 = vpack.c.b16 %v1117, %v1117
        %1119 = vrot.lane.b32.xlu0 %v1118, 8
        %v1120 = vpop.permute.xlu0 %1119
        %vm1122 = vcmask 126016
        %1123 = vst.msk [vmem:[#allocation4] sm:$0xf] %vm1122, %v1120
        %v1124 = vld [vmem:[#allocation3] sm:$0xf]
        %v1126 = vunpack.c.l.b16 %v1124
        %v1127 = vpack.c.b16 %v1126, %v1126
        %1128 = vrot.lane.b32.xlu0 %v1127, 112
        %v1129 = vpop.permute.xlu0 %1128
        %1130 = vrot.lane.b32.xlu0 %v1127, 80
        %v1131 = vpop.permute.xlu0 %1130
        %v1133 = vsel %vm883, %v1129, 0
        %v1136 = vsel %vm883, %v1131, 0
        %1138 = vmatprep.subr.bf16.mxu0 0
        %1139 = vmatpush1.bf16.xpose.msra.mxu0 0
        %1140 = vmatprep.subr.bf16.mxu0 0
        %1141 = vmatpush1.bf16.xpose.msra.mxu0 0
        %1142 = vmatprep.subr.bf16.mxu0 0
        %1143 = vmatpush1.bf16.xpose.msra.mxu0 0
        %1144 = vmatprep.subr.bf16.mxu0 0
        %1145 = vmatpush1.bf16.xpose.msra.mxu0 0
        %1146 = vmatprep.subr.bf16.mxu0 0
        %1147 = vmatpush1.bf16.xpose.msra.mxu0 0
        %1148 = vmatprep.subr.bf16.mxu0 0
        %1149 = vmatpush1.bf16.xpose.msra.mxu0 0
        %1150 = vmatprep.subr.bf16.mxu0 0
        %1151 = vmatpush1.bf16.xpose.msra.mxu0 0
        %1152 = vmatprep.subr.bf16.mxu0 0
        %1153 = vmatpush1.bf16.xpose.msra.mxu0 %v1136
        %1154 = vmatprep.subr.bf16.mxu0 0
        %1155 = vmatpush2.bf16.xpose.msra.mxu0 0
        %1156 = vmatprep.subr.bf16.mxu0 0
        %1157 = vmatpush2.bf16.xpose.msra.mxu0 0
        %1158 = vmatprep.subr.bf16.mxu0 0
        %1159 = vmatpush2.bf16.xpose.msra.mxu0 0
        %1160 = vmatprep.subr.bf16.mxu0 0
        %1161 = vmatpush2.bf16.xpose.msra.mxu0 0
        %1162 = vmatprep.subr.bf16.mxu0 0
        %1163 = vmatpush2.bf16.xpose.msra.mxu0 0
        %1164 = vmatprep.subr.bf16.mxu0 0
        %1165 = vmatpush2.bf16.xpose.msra.mxu0 0
        %1166 = vmatprep.subr.bf16.mxu0 0
        %1167 = vmatpush2.bf16.xpose.msra.mxu0 0
        %1168 = vmatprep.subr.bf16.mxu0 0
        %1169 = vmatpush2.bf16.xpose.msra.mxu0 0
        %1170 = vmatprep.mubr.bf16.mxu0 0
        %1171 = vmatmul.mubr.bf16.gmra.mxu0 %v1133
        %v1172 = vpop.f32.mrf.mxu0
        %v1173 = vadd.f32 0.0, %v1172
        %v1174 = vpop.f32.mrf.mxu0
        %v1175 = vpop.f32.mrf.mxu0
        %v1176 = vpop.f32.mrf.mxu0
        %1177 = vdwg.mxu0
        %v1178 = vmul.f32 %v1173, 0.35355338
        %v1179 = vadd.f32 %v1178, %v876
        %v1180 = vsel %vm883, %v1179, -inf
        %1181 = vmax.xlane.f32.xlu0 %v1180
        %v1182 = vpop.xlane.xlu0 %1181
        %v1183 = vsub.f32 %v1179, %v1182
        %v1184 = vmul.f32 %v1183, 1.442695
        %v1185 = vpow.pop %v1184
        %v1186 = vsel %vm883, %v1185, 0.0
        %1187 = vadd.xlane.f32.xlu0 %v1186
        %v1188 = vpop.xlane.xlu0 %1187
        %v1189 = vrcp.pop %v1188
        %v1190 = vmul.f32 %v1185, %v1189
        %v1191 = vpack.c.bf16 %v1190, %v1190
        %s1192 = scalar_lea.vmem %s714, 8 [#allocation7]
        %1193 = vst.msk [vmem:[%s1192] sm:$0xf] %vm944, %v1191
        %1194 = vrot.lane.b32.xlu0 %v1127, 48
        %v1195 = vpop.permute.xlu0 %1194
        %v1197 = vsel %vm883, %v1191, 0
        %v1200 = vsel %vm951, %v1195, 0
        %1202 = vmatprep.subr.bf16.mxu0 0
        %1203 = vmatpush1.bf16.msra.mxu0 0
        %1204 = vmatprep.subr.bf16.mxu0 0
        %1205 = vmatpush1.bf16.msra.mxu0 0
        %1206 = vmatprep.subr.bf16.mxu0 0
        %1207 = vmatpush1.bf16.msra.mxu0 0
        %1208 = vmatprep.subr.bf16.mxu0 0
        %1209 = vmatpush1.bf16.msra.mxu0 0
        %1210 = vmatprep.subr.bf16.mxu0 0
        %1211 = vmatpush1.bf16.msra.mxu0 0
        %1212 = vmatprep.subr.bf16.mxu0 0
        %1213 = vmatpush1.bf16.msra.mxu0 0
        %1214 = vmatprep.subr.bf16.mxu0 0
        %1215 = vmatpush1.bf16.msra.mxu0 0
        %1216 = vmatprep.subr.bf16.mxu0 0
        %1217 = vmatpush1.bf16.msra.mxu0 %v1200
        %1218 = vmatprep.subr.bf16.mxu0 0
        %1219 = vmatpush2.bf16.msra.mxu0 0
        %1220 = vmatprep.subr.bf16.mxu0 0
        %1221 = vmatpush2.bf16.msra.mxu0 0
        %1222 = vmatprep.subr.bf16.mxu0 0
        %1223 = vmatpush2.bf16.msra.mxu0 0
        %1224 = vmatprep.subr.bf16.mxu0 0
        %1225 = vmatpush2.bf16.msra.mxu0 0
        %1226 = vmatprep.subr.bf16.mxu0 0
        %1227 = vmatpush2.bf16.msra.mxu0 0
        %1228 = vmatprep.subr.bf16.mxu0 0
        %1229 = vmatpush2.bf16.msra.mxu0 0
        %1230 = vmatprep.subr.bf16.mxu0 0
        %1231 = vmatpush2.bf16.msra.mxu0 0
        %1232 = vmatprep.subr.bf16.mxu0 0
        %1233 = vmatpush2.bf16.msra.mxu0 0
        %1234 = vmatprep.mubr.bf16.mxu0 0
        %1235 = vmatmul.mubr.bf16.gmra.mxu0 %v1197
        %v1236 = vpop.f32.mrf.mxu0
        %v1237 = vadd.f32 0.0, %v1236
        %v1238 = vpop.f32.mrf.mxu0
        %v1239 = vpop.f32.mrf.mxu0
        %v1240 = vpop.f32.mrf.mxu0
        %1241 = vdwg.mxu0
        %v1242 = vpack.c.bf16 %v1237, %v1237
        %v1244 = vunpack.c.l.b16 %v1242
        %v1245 = vpack.c.b16 %v1244, %v1244
        %1246 = vrot.lane.b32.xlu0 %v1245, 16
        %v1247 = vpop.permute.xlu0 %1246
        %vm1249 = vcmask 191616
        %1250 = vst.msk [vmem:[#allocation4] sm:$0xf] %vm1249, %v1247
        %v1251 = vld [vmem:[#allocation3] sm:$0xf]
        %v1253 = vunpack.c.l.b16 %v1251
        %v1254 = vpack.c.b16 %v1253, %v1253
        %1255 = vrot.lane.b32.xlu0 %v1254, 104
        %v1256 = vpop.permute.xlu0 %1255
        %1257 = vrot.lane.b32.xlu0 %v1254, 72
        %v1258 = vpop.permute.xlu0 %1257
        %v1260 = vsel %vm883, %v1256, 0
        %v1263 = vsel %vm883, %v1258, 0
        %1265 = vmatprep.subr.bf16.mxu0 0
        %1266 = vmatpush1.bf16.xpose.msra.mxu0 0
        %1267 = vmatprep.subr.bf16.mxu0 0
        %1268 = vmatpush1.bf16.xpose.msra.mxu0 0
        %1269 = vmatprep.subr.bf16.mxu0 0
        %1270 = vmatpush1.bf16.xpose.msra.mxu0 0
        %1271 = vmatprep.subr.bf16.mxu0 0
        %1272 = vmatpush1.bf16.xpose.msra.mxu0 0
        %1273 = vmatprep.subr.bf16.mxu0 0
        %1274 = vmatpush1.bf16.xpose.msra.mxu0 0
        %1275 = vmatprep.subr.bf16.mxu0 0
        %1276 = vmatpush1.bf16.xpose.msra.mxu0 0
        %1277 = vmatprep.subr.bf16.mxu0 0
        %1278 = vmatpush1.bf16.xpose.msra.mxu0 0
        %1279 = vmatprep.subr.bf16.mxu0 0
        %1280 = vmatpush1.bf16.xpose.msra.mxu0 %v1263
        %1281 = vmatprep.subr.bf16.mxu0 0
        %1282 = vmatpush2.bf16.xpose.msra.mxu0 0
        %1283 = vmatprep.subr.bf16.mxu0 0
        %1284 = vmatpush2.bf16.xpose.msra.mxu0 0
        %1285 = vmatprep.subr.bf16.mxu0 0
        %1286 = vmatpush2.bf16.xpose.msra.mxu0 0
        %1287 = vmatprep.subr.bf16.mxu0 0
        %1288 = vmatpush2.bf16.xpose.msra.mxu0 0
        %1289 = vmatprep.subr.bf16.mxu0 0
        %1290 = vmatpush2.bf16.xpose.msra.mxu0 0
        %1291 = vmatprep.subr.bf16.mxu0 0
        %1292 = vmatpush2.bf16.xpose.msra.mxu0 0
        %1293 = vmatprep.subr.bf16.mxu0 0
        %1294 = vmatpush2.bf16.xpose.msra.mxu0 0
        %1295 = vmatprep.subr.bf16.mxu0 0
        %1296 = vmatpush2.bf16.xpose.msra.mxu0 0
        %1297 = vmatprep.mubr.bf16.mxu0 0
        %1298 = vmatmul.mubr.bf16.gmra.mxu0 %v1260
        %v1299 = vpop.f32.mrf.mxu0
        %v1300 = vadd.f32 0.0, %v1299
        %v1301 = vpop.f32.mrf.mxu0
        %v1302 = vpop.f32.mrf.mxu0
        %v1303 = vpop.f32.mrf.mxu0
        %1304 = vdwg.mxu0
        %v1305 = vmul.f32 %v1300, 0.35355338
        %v1306 = vadd.f32 %v1305, %v876
        %v1307 = vsel %vm883, %v1306, -inf
        %1308 = vmax.xlane.f32.xlu0 %v1307
        %v1309 = vpop.xlane.xlu0 %1308
        %v1310 = vsub.f32 %v1306, %v1309
        %v1311 = vmul.f32 %v1310, 1.442695
        %v1312 = vpow.pop %v1311
        %v1313 = vsel %vm883, %v1312, 0.0
        %1314 = vadd.xlane.f32.xlu0 %v1313
        %v1315 = vpop.xlane.xlu0 %1314
        %v1316 = vrcp.pop %v1315
        %v1317 = vmul.f32 %v1312, %v1316
        %v1318 = vpack.c.bf16 %v1317, %v1317
        %s1319 = scalar_lea.vmem %s714, 12 [#allocation7]
        %1320 = vst.msk [vmem:[%s1319] sm:$0xf] %vm944, %v1318
        %1321 = vrot.lane.b32.xlu0 %v1254, 40
        %v1322 = vpop.permute.xlu0 %1321
        %v1324 = vsel %vm883, %v1318, 0
        %v1327 = vsel %vm951, %v1322, 0
        %1329 = vmatprep.subr.bf16.mxu0 0
        %1330 = vmatpush1.bf16.msra.mxu0 0
        %1331 = vmatprep.subr.bf16.mxu0 0
        %1332 = vmatpush1.bf16.msra.mxu0 0
        %1333 = vmatprep.subr.bf16.mxu0 0
        %1334 = vmatpush1.bf16.msra.mxu0 0
        %1335 = vmatprep.subr.bf16.mxu0 0
        %1336 = vmatpush1.bf16.msra.mxu0 0
        %1337 = vmatprep.subr.bf16.mxu0 0
        %1338 = vmatpush1.bf16.msra.mxu0 0
        %1339 = vmatprep.subr.bf16.mxu0 0
        %1340 = vmatpush1.bf16.msra.mxu0 0
        %1341 = vmatprep.subr.bf16.mxu0 0
        %1342 = vmatpush1.bf16.msra.mxu0 0
        %1343 = vmatprep.subr.bf16.mxu0 0
        %1344 = vmatpush1.bf16.msra.mxu0 %v1327
        %1345 = vmatprep.subr.bf16.mxu0 0
        %1346 = vmatpush2.bf16.msra.mxu0 0
        %1347 = vmatprep.subr.bf16.mxu0 0
        %1348 = vmatpush2.bf16.msra.mxu0 0
        %1349 = vmatprep.subr.bf16.mxu0 0
        %1350 = vmatpush2.bf16.msra.mxu0 0
        %1351 = vmatprep.subr.bf16.mxu0 0
        %1352 = vmatpush2.bf16.msra.mxu0 0
        %1353 = vmatprep.subr.bf16.mxu0 0
        %1354 = vmatpush2.bf16.msra.mxu0 0
        %1355 = vmatprep.subr.bf16.mxu0 0
        %1356 = vmatpush2.bf16.msra.mxu0 0
        %1357 = vmatprep.subr.bf16.mxu0 0
        %1358 = vmatpush2.bf16.msra.mxu0 0
        %1359 = vmatprep.subr.bf16.mxu0 0
        %1360 = vmatpush2.bf16.msra.mxu0 0
        %1361 = vmatprep.mubr.bf16.mxu0 0
        %1362 = vmatmul.mubr.bf16.gmra.mxu0 %v1324
        %v1363 = vpop.f32.mrf.mxu0
        %v1364 = vadd.f32 0.0, %v1363
        %v1365 = vpop.f32.mrf.mxu0
        %v1366 = vpop.f32.mrf.mxu0
        %v1367 = vpop.f32.mrf.mxu0
        %1368 = vdwg.mxu0
        %v1369 = vpack.c.bf16 %v1364, %v1364
        %v1371 = vunpack.c.l.b16 %v1369
        %v1372 = vpack.c.b16 %v1371, %v1371
        %1373 = vrot.lane.b32.xlu0 %v1372, 24
        %v1374 = vpop.permute.xlu0 %1373
        %vm1376 = vcmask 257216
        %1377 = vst.msk [vmem:[#allocation4] sm:$0xf] %vm1376, %v1374
        %v1378 = vld [vmem:[#allocation4] sm:$0xf]
        %v1379 = vld [vmem:[%s737] sm:$0xf]
        %v1380 = vld [vmem:[%s737 + $0x4] sm:$0xf]
        %v1381 = vld [vmem:[%s737 + $0x8] sm:$0xf]
        %v1382 = vld [vmem:[%s737 + $0xc] sm:$0xf]
        %v1383 = vld [vmem:[%s740] sm:$0x1]
        %v1385 = vlaneseq
        %v1386 = vshrl.u32 %v1385, 7
        %v1387 = vsub.s32 0, %v1386
        %v1388 = vrot.slane %v1383, %v1387
        %v1394 = vunpack.c.l.b16 %v1379
        %v1395 = vunpack.c.l.b16 %v1380
        %v1396 = vunpack.c.l.b16 %v1381
        %v1397 = vunpack.c.l.b16 %v1382
        %v1398 = vpack.c.b16 %v1395, %v1394
        %v1399 = vpack.c.b16 %v1397, %v1396
        %v1403 = vsel %vm777, %v1378, 0
        %1405 = vmatprep.subr.bf16.mxu0 0
        %1406 = vmatpush1.bf16.msra.mxu0 0
        %1407 = vmatprep.subr.bf16.mxu0 0
        %1408 = vmatpush1.bf16.msra.mxu0 0
        %1409 = vmatprep.subr.bf16.mxu0 0
        %1410 = vmatpush1.bf16.msra.mxu0 0
        %1411 = vmatprep.subr.bf16.mxu0 0
        %1412 = vmatpush1.bf16.msra.mxu0 0
        %1413 = vmatprep.subr.bf16.mxu0 0
        %1414 = vmatpush1.bf16.msra.mxu0 0
        %1415 = vmatprep.subr.bf16.mxu0 0
        %1416 = vmatpush1.bf16.msra.mxu0 0
        %1417 = vmatprep.subr.bf16.mxu0 0
        %1418 = vmatpush1.bf16.msra.mxu0 %v1399
        %1419 = vmatprep.subr.bf16.mxu0 0
        %1420 = vmatpush1.bf16.msra.mxu0 %v1398
        %1421 = vmatprep.subr.bf16.mxu0 0
        %1422 = vmatpush2.bf16.msra.mxu0 0
        %1423 = vmatprep.subr.bf16.mxu0 0
        %1424 = vmatpush2.bf16.msra.mxu0 0
        %1425 = vmatprep.subr.bf16.mxu0 0
        %1426 = vmatpush2.bf16.msra.mxu0 0
        %1427 = vmatprep.subr.bf16.mxu0 0
        %1428 = vmatpush2.bf16.msra.mxu0 0
        %1429 = vmatprep.subr.bf16.mxu0 0
        %1430 = vmatpush2.bf16.msra.mxu0 0
        %1431 = vmatprep.subr.bf16.mxu0 0
        %1432 = vmatpush2.bf16.msra.mxu0 0
        %1433 = vmatprep.subr.bf16.mxu0 0
        %1434 = vmatpush2.bf16.msra.mxu0 0
        %1435 = vmatprep.subr.bf16.mxu0 0
        %1436 = vmatpush2.bf16.msra.mxu0 0
        %1437 = vmatprep.mubr.bf16.mxu0 0
        %1438 = vmatmul.mubr.bf16.gmra.mxu0 %v1403
        %v1439 = vpop.f32.mrf.mxu0
        %v1440 = vadd.f32 %v1388, %v1439
        %v1441 = vpop.f32.mrf.mxu0
        %v1442 = vpop.f32.mrf.mxu0
        %v1443 = vpop.f32.mrf.mxu0
        %1444 = vdwg.mxu0
        %v1445 = vadd.f32 %v774, %v1440
        %v1446 = vld [vmem:[%s743] sm:$0x1]
        %v1447 = vld [vmem:[%s746] sm:$0x1]
        %v1448 = vsel %vm777, %v1445, 0.0
        %1449 = vadd.xlane.f32.xlu0 %v1448
        %v1450 = vpop.xlane.xlu0 %1449
        %v1451 = vmul.f32 %v1450, %v781
        %v1452 = vsub.f32 %v1445, %v1451
        %v1453 = vmul.f32 %v1452, %v1452
        %v1454 = vsel %vm777, %v1453, 0.0
        %1455 = vadd.xlane.f32.xlu0 %v1454
        %v1456 = vpop.xlane.xlu0 %1455
        %v1457 = vmul.f32 %v1456, %v781
        %v1458 = vadd.f32 %v1457, 1e-05
        %v1459 = vrsqrt.pop %v1458
        %v1460 = vmul.f32 %v1452, %v1459
        %v1462 = vlaneseq
        %v1463 = vshrl.u32 %v1462, 7
        %v1464 = vsub.s32 0, %v1463
        %v1465 = vrot.slane %v1446, %v1464
        %v1467 = vmul.f32 %v1460, %v1465
        %v1469 = vlaneseq
        %v1470 = vshrl.u32 %v1469, 7
        %v1471 = vsub.s32 0, %v1470
        %v1472 = vrot.slane %v1447, %v1471
        %v1474 = vadd.f32 %v1467, %v1472
        %v1475 = vpack.c.bf16 %v1474, %v1474
        %v1476 = vld [vmem:[%s751] sm:$0xf]
        %v1477 = vld [vmem:[%s751 + $0x4] sm:$0xf]
        %v1478 = vld [vmem:[%s751 + $0x8] sm:$0xf]
        %v1479 = vld [vmem:[%s751 + $0xc] sm:$0xf]
        %v1480 = vld [vmem:[%s754] sm:$0x1]
        %v1482 = vlaneseq
        %v1483 = vshrl.u32 %v1482, 7
        %v1484 = vsub.s32 0, %v1483
        %v1485 = vrot.slane %v1480, %v1484
        %v1491 = vunpack.c.l.b16 %v1476
        %v1492 = vunpack.c.l.b16 %v1477
        %v1493 = vunpack.c.l.b16 %v1478
        %v1494 = vunpack.c.l.b16 %v1479
        %v1495 = vpack.c.b16 %v1492, %v1491
        %v1496 = vpack.c.b16 %v1494, %v1493
        %v1500 = vsel %vm777, %v1475, 0
        %1502 = vmatprep.subr.bf16.mxu0 0
        %1503 = vmatpush1.bf16.msra.mxu0 0
        %1504 = vmatprep.subr.bf16.mxu0 0
        %1505 = vmatpush1.bf16.msra.mxu0 0
        %1506 = vmatprep.subr.bf16.mxu0 0
        %1507 = vmatpush1.bf16.msra.mxu0 0
        %1508 = vmatprep.subr.bf16.mxu0 0
        %1509 = vmatpush1.bf16.msra.mxu0 0
        %1510 = vmatprep.subr.bf16.mxu0 0
        %1511 = vmatpush1.bf16.msra.mxu0 0
        %1512 = vmatprep.subr.bf16.mxu0 0
        %1513 = vmatpush1.bf16.msra.mxu0 0
        %1514 = vmatprep.subr.bf16.mxu0 0
        %1515 = vmatpush1.bf16.msra.mxu0 %v1496
        %1516 = vmatprep.subr.bf16.mxu0 0
        %1517 = vmatpush1.bf16.msra.mxu0 %v1495
        %1518 = vmatprep.subr.bf16.mxu0 0
        %1519 = vmatpush2.bf16.msra.mxu0 0
        %1520 = vmatprep.subr.bf16.mxu0 0
        %1521 = vmatpush2.bf16.msra.mxu0 0
        %1522 = vmatprep.subr.bf16.mxu0 0
        %1523 = vmatpush2.bf16.msra.mxu0 0
        %1524 = vmatprep.subr.bf16.mxu0 0
        %1525 = vmatpush2.bf16.msra.mxu0 0
        %1526 = vmatprep.subr.bf16.mxu0 0
        %1527 = vmatpush2.bf16.msra.mxu0 0
        %1528 = vmatprep.subr.bf16.mxu0 0
        %1529 = vmatpush2.bf16.msra.mxu0 0
        %1530 = vmatprep.subr.bf16.mxu0 0
        %1531 = vmatpush2.bf16.msra.mxu0 0
        %1532 = vmatprep.subr.bf16.mxu0 0
        %1533 = vmatpush2.bf16.msra.mxu0 0
        %1534 = vmatprep.mubr.bf16.mxu0 0
        %1535 = vmatmul.mubr.bf16.gmra.mxu0 %v1500
        %v1536 = vpop.f32.mrf.mxu0
        %v1537 = vadd.f32 %v1485, %v1536
        %v1538 = vpop.f32.mrf.mxu0
        %v1539 = vpop.f32.mrf.mxu0
        %v1540 = vpop.f32.mrf.mxu0
        %1541 = vdwg.mxu0
        %v1542 = vmul.f32 %v1537, 0.5
        %v1543 = vmul.f32 %v1537, 0.044715
        %v1544 = vmul.f32 %v1543, %v1537
        %v1545 = vmul.f32 %v1544, %v1537
        %v1546 = vadd.f32 %v1537, %v1545
        %v1547 = vmul.f32 %v1546, 0.7978846
        %v1548 = vtanh.pop %v1547
        %v1549 = vadd.f32 %v1548, 1.0
        %v1550 = vmul.f32 %v1542, %v1549
        %v1551 = vpack.c.bf16 %v1550, %v1550
        %v1552 = vld [vmem:[%s759] sm:$0xf]
        %v1553 = vld [vmem:[%s759 + $0x4] sm:$0xf]
        %v1554 = vld [vmem:[%s759 + $0x8] sm:$0xf]
        %v1555 = vld [vmem:[%s759 + $0xc] sm:$0xf]
        %v1556 = vld [vmem:[%s759 + $0x10] sm:$0xf]
        %v1557 = vld [vmem:[%s759 + $0x14] sm:$0xf]
        %v1558 = vld [vmem:[%s759 + $0x18] sm:$0xf]
        %v1559 = vld [vmem:[%s759 + $0x1c] sm:$0xf]
        %v1560 = vld [vmem:[%s759 + $0x20] sm:$0xf]
        %v1561 = vld [vmem:[%s759 + $0x24] sm:$0xf]
        %v1562 = vld [vmem:[%s759 + $0x28] sm:$0xf]
        %v1563 = vld [vmem:[%s759 + $0x2c] sm:$0xf]
        %v1564 = vld [vmem:[%s759 + $0x30] sm:$0xf]
        %v1565 = vld [vmem:[%s759 + $0x34] sm:$0xf]
        %v1566 = vld [vmem:[%s759 + $0x38] sm:$0xf]
        %v1567 = vld [vmem:[%s759 + $0x3c] sm:$0xf]
        %v1568 = vld [vmem:[%s762] sm:$0x1]
        %v1570 = vlaneseq
        %v1571 = vshrl.u32 %v1570, 7
        %v1572 = vsub.s32 0, %v1571
        %v1573 = vrot.slane %v1568, %v1572
        %v1591 = vunpack.c.l.b16 %v1552
        %v1592 = vunpack.c.l.b16 %v1553
        %v1593 = vunpack.c.l.b16 %v1554
        %v1594 = vunpack.c.l.b16 %v1555
        %v1595 = vunpack.c.l.b16 %v1556
        %v1596 = vunpack.c.l.b16 %v1557
        %v1597 = vunpack.c.l.b16 %v1558
        %v1598 = vunpack.c.l.b16 %v1559
        %v1599 = vunpack.c.l.b16 %v1560
        %v1600 = vunpack.c.l.b16 %v1561
        %v1601 = vunpack.c.l.b16 %v1562
        %v1602 = vunpack.c.l.b16 %v1563
        %v1603 = vunpack.c.l.b16 %v1564
        %v1604 = vunpack.c.l.b16 %v1565
        %v1605 = vunpack.c.l.b16 %v1566
        %v1606 = vunpack.c.l.b16 %v1567
        %v1607 = vpack.c.b16 %v1592, %v1591
        %v1608 = vpack.c.b16 %v1594, %v1593
        %v1609 = vpack.c.b16 %v1596, %v1595
        %v1610 = vpack.c.b16 %v1598, %v1597
        %v1611 = vpack.c.b16 %v1600, %v1599
        %v1612 = vpack.c.b16 %v1602, %v1601
        %v1613 = vpack.c.b16 %v1604, %v1603
        %v1614 = vpack.c.b16 %v1606, %v1605
        %1623 = vmatprep.subr.bf16.mxu0 0
        %1624 = vmatpush1.bf16.msra.mxu0 %v1614
        %1625 = vmatprep.subr.bf16.mxu0 0
        %1626 = vmatpush1.bf16.msra.mxu0 %v1613
        %1627 = vmatprep.subr.bf16.mxu0 0
        %1628 = vmatpush1.bf16.msra.mxu0 %v1612
        %1629 = vmatprep.subr.bf16.mxu0 0
        %1630 = vmatpush1.bf16.msra.mxu0 %v1611
        %1631 = vmatprep.subr.bf16.mxu0 0
        %1632 = vmatpush1.bf16.msra.mxu0 %v1610
        %1633 = vmatprep.subr.bf16.mxu0 0
        %1634 = vmatpush1.bf16.msra.mxu0 %v1609
        %1635 = vmatprep.subr.bf16.mxu0 0
        %1636 = vmatpush1.bf16.msra.mxu0 %v1608
        %1637 = vmatprep.subr.bf16.mxu0 0
        %1638 = vmatpush1.bf16.msra.mxu0 %v1607
        %1639 = vmatprep.subr.bf16.mxu0 0
        %1640 = vmatpush2.bf16.msra.mxu0 0
        %1641 = vmatprep.subr.bf16.mxu0 0
        %1642 = vmatpush2.bf16.msra.mxu0 0
        %1643 = vmatprep.subr.bf16.mxu0 0
        %1644 = vmatpush2.bf16.msra.mxu0 0
        %1645 = vmatprep.subr.bf16.mxu0 0
        %1646 = vmatpush2.bf16.msra.mxu0 0
        %1647 = vmatprep.subr.bf16.mxu0 0
        %1648 = vmatpush2.bf16.msra.mxu0 0
        %1649 = vmatprep.subr.bf16.mxu0 0
        %1650 = vmatpush2.bf16.msra.mxu0 0
        %1651 = vmatprep.subr.bf16.mxu0 0
        %1652 = vmatpush2.bf16.msra.mxu0 0
        %1653 = vmatprep.subr.bf16.mxu0 0
        %1654 = vmatpush2.bf16.msra.mxu0 0
        %1655 = vmatprep.mubr.bf16.mxu0 0
        %1656 = vmatmul.mubr.bf16.gmra.mxu0 %v1551
        %v1657 = vpop.f32.mrf.mxu0
        %v1658 = vadd.f32 %v1573, %v1657
        %v1659 = vpop.f32.mrf.mxu0
        %v1660 = vpop.f32.mrf.mxu0
        %v1661 = vpop.f32.mrf.mxu0
        %1662 = vdwg.mxu0
        %v1663 = vadd.f32 %v1445, %v1658
        %1664 = vst.msk [vmem:[#allocation2] sm:$0xff] %vm777, %v1663
        %p1665 = scmp.eq.s32.totalorder %s40, 1
        // Predicated region
        $region89: #{tpu_custom_call.1} parent=83 // pred_check
          %p1666 = pneg %p1665
        $region90: #{tpu_custom_call.1} parent=83 // pred_check_branch
          %1668 = sbr.rel (%p1666) target = $region92
        $region91: #{tpu_custom_call.1} parent=83 // pred_region
          %v1669 = vld [vmem:[%s14] sm:$0x1]
          %v1670 = vld [vmem:[%s15] sm:$0x1]
          %v1671 = vsel %vm777, %v1663, 0.0
          %1672 = vadd.xlane.f32.xlu0 %v1671
          %v1673 = vpop.xlane.xlu0 %1672
          %v1674 = vmul.f32 %v1673, %v781
          %v1675 = vsub.f32 %v1663, %v1674
          %v1676 = vmul.f32 %v1675, %v1675
          %v1677 = vsel %vm777, %v1676, 0.0
          %1678 = vadd.xlane.f32.xlu0 %v1677
          %v1679 = vpop.xlane.xlu0 %1678
          %v1680 = vmul.f32 %v1679, %v781
          %v1681 = vadd.f32 %v1680, 1e-05
          %v1682 = vrsqrt.pop %v1681
          %v1683 = vmul.f32 %v1675, %v1682
          %v1685 = vlaneseq
          %v1686 = vshrl.u32 %v1685, 7
          %v1687 = vsub.s32 0, %v1686
          %v1688 = vrot.slane %v1669, %v1687
          %v1690 = vmul.f32 %v1683, %v1688
          %v1692 = vlaneseq
          %v1693 = vshrl.u32 %v1692, 7
          %v1694 = vsub.s32 0, %v1693
          %v1695 = vrot.slane %v1670, %v1694
          %v1697 = vadd.f32 %v1690, %v1695
          %1698 = vst.msk [vmem:[%s707] sm:$0xff] %vm777, %v1697
        $region92: #{tpu_custom_call.1} parent=83 // pred_fallthru
          _
        %s1699 = sand.u32 %s456, 1
        %s1700 = scalar_lea.sflag [#allocation6], %s1699
        %s1701 = sand.u32 %s456, 1
        %s1702 = smul.addr %s1701, 8
        %s1703 = scalar_lea.vmem [#allocation5], %s1702
        %s1704 = sand.u32 %s486, 1
        %s1705 = scalar_lea.sflag [#allocation8], %s1704
        %s1706 = sand.u32 %s486, 1
        %s1707 = smul.addr %s1706, 16
        %s1708 = scalar_lea.vmem [#allocation7], %s1707
        // Predicated region
        $region93: #{tpu_custom_call.1} parent=83 // pred_check
          %p1709 = pneg %p466
        $region94: #{tpu_custom_call.1} parent=83 // pred_check_branch
          %1711 = sbr.rel (%p1709) target = $region96
        $region95: #{tpu_custom_call.1} parent=83 // pred_region
          %s1713 = ssub.s32 128, 128
          %1714 = vsyncadd %s1700, %s1713
          %s1715 = smul.addr %s39, 128
          %s1716 = scalar_lea.hbm %s16, %s1715
          %s1718 = sshll.u32 %s1703, 4
          %s1719 = int_to_ptr.vmem [resolvable:$true] %s1718
          %1721 = dma.vmem_to_hbm [thread:$0]  %s1719, 128, %s1716, %s1700
        $region96: #{tpu_custom_call.1} parent=83 // pred_fallthru
          _
        // Predicated region
        $region97: #{tpu_custom_call.1} parent=83 // pred_check
          %p1722 = pneg %p496
        $region98: #{tpu_custom_call.1} parent=83 // pred_check_branch
          %1724 = sbr.rel (%p1722) target = $region100
        $region99: #{tpu_custom_call.1} parent=83 // pred_region
          %s1725 = smul.u32 %s40, 2
          %s1726 = sadd.s32 %s1725, %s39
          %s1728 = ssub.s32 256, 256
          %1729 = vsyncadd %s1705, %s1728
          %s1730 = smul.addr %s1726, 4
          %s1731 = smul.addr %s1730, 64
          %s1732 = scalar_lea.hbm %s17, %s1731
          %s1733 = sshll.u32 %s1708, 4
          %s1734 = int_to_ptr.vmem [resolvable:$true] %s1733
          %1739 = dma.vmem_to_hbm [thread:$0]  %s1734, 256, %s1732, %s1705, 64, 64, 4
        $region100: #{tpu_custom_call.1} parent=83 // pred_fallthru
          _
      $region84: #{tpu_custom_call.1} parent=5 // pred_fallthru
        _
      %p1740 = scmp.le.s32.totalorder 2, %s30
      // Predicated region
      $region101: #{tpu_custom_call.1} parent=5 // pred_check
        %p1741 = pneg %p1740
      $region102: #{tpu_custom_call.1} parent=5 // pred_check_branch
        %1743 = sbr.rel (%p1741) target = $region104
      $region103: #{tpu_custom_call.1} parent=5 // pred_region
        %s1744 = ssub.s32 %s30, 2
        // Predicated region
        $region105: #{tpu_custom_call.1} parent=103 // pred_check
          %p1745 = pneg %p472
        $region106: #{tpu_custom_call.1} parent=103 // pred_check_branch
          %1747 = sbr.rel (%p1745) target = $region108
        $region107: #{tpu_custom_call.1} parent=103 // pred_region
          %s1748 = sand.u32 %s457, 1
          %s1749 = scalar_lea.sflag [#allocation6], %s1748
          %s1750 = sand.u32 %s457, 1
          %s1751 = smul.addr %s1750, 8
          %s1752 = scalar_lea.vmem [#allocation5], %s1751
          %1753 = dma.done %s1749, 128
        $region108: #{tpu_custom_call.1} parent=103 // pred_fallthru
          _
        // Predicated region
        $region109: #{tpu_custom_call.1} parent=103 // pred_check
          %p1754 = pneg %p502
        $region110: #{tpu_custom_call.1} parent=103 // pred_check_branch
          %1756 = sbr.rel (%p1754) target = $region112
        $region111: #{tpu_custom_call.1} parent=103 // pred_region
          %s1757 = sand.u32 %s487, 1
          %s1758 = scalar_lea.sflag [#allocation8], %s1757
          %s1759 = sand.u32 %s487, 1
          %s1760 = smul.addr %s1759, 16
          %s1761 = scalar_lea.vmem [#allocation7], %s1760
          %1762 = dma.done %s1758, 256
        $region112: #{tpu_custom_call.1} parent=103 // pred_fallthru
          _
      $region104: #{tpu_custom_call.1} parent=5 // pred_fallthru
        _
    $region6: #{tpu_custom_call.1} parent=1 // loop_footer
      %s34 = sadd.s32 1, %s30
    $region7: #{tpu_custom_call.1} parent=1 // loop_footer_branch
      %29 = sbr.rel target = $region3
    $region8: #{tpu_custom_call.1} parent=1 // loop_exit
      _
    %1763 = vsyncpa [#allocation6], 1
    %s1764 = scalar_lea.sflag [#allocation6], 1
    %1765 = vsyncpa %s1764, 1
    %1766 = vsyncpa [#allocation8], 1
    %s1767 = scalar_lea.sflag [#allocation8], 1
    %1768 = vsyncpa %s1767, 1

</llo_original>
